<compile_context>
chip_gen: v7x
topology: tpu7x:2x2x1
jax: 0.10.0
libtpu: 0.0.40
codegen_flags: <defaults>
</compile_context>

<pallas_src>
import functools
import math

import jax
import jax.numpy as jnp
from jax.experimental import pallas as pl
from jax.experimental.pallas import tpu as pltpu


# ----------------------------------------------------------------------------
# Pallas kernel: TB batch elements per grid step, all tensors (C, H*W) in VMEM.
# ----------------------------------------------------------------------------
def _resnet_block_kernel(x_ref, w1_ref, b1_ref, w2_ref, b2_ref, mask_ref,
                         o_ref, rhs_ref, *, H, W):
    HW = H * W
    TB = x_ref.shape[0]
    Cin = x_ref.shape[1]

    # Constants: loaded once per grid step (constant index maps).
    w1 = w1_ref[...]                                  # (Cout, 9*Cin), MXU dtype
    w2 = w2_ref[...]
    b1 = b1_ref[...]                                  # (Cout, 1), f32
    b2 = b2_ref[...]
    mask = mask_ref[...]                              # (9, HW) border mask, f32

    # Flattened-spatial shift for each of the 9 taps, expressed as a
    # pltpu.roll shift so that shifted[:, i] = inp[:, (i + s) % HW].
    shifts = [(-(a * W + b)) % HW for a in (-1, 0, 1) for b in (-1, 0, 1)]

    def build_rhs(inp):
        # inp: (Cin, HW) f32.  Writes the 9 masked, shifted taps in place into
        # the shared VMEM scratch (tap-major, channel-minor).
        for t, sh in enumerate(shifts):
            shifted = pltpu.roll(inp, shift=sh, axis=1) if sh else inp
            if t == 4:                                # center tap: mask all-ones
                tap = shifted
            else:
                tap = shifted * mask[t:t + 1]         # zero outside the image
            rhs_ref[pl.ds(t * Cin, Cin), :] = tap.astype(rhs_ref.dtype)

    def per_image(b, carry):
        x = x_ref[b]                                  # (Cin, HW), f32

        # conv1 + BN1 (folded) + ReLU ; Dropout(p=0.1) is identity at inference.
        build_rhs(x)
        y = jnp.dot(w1, rhs_ref[...], preferred_element_type=jnp.float32) + b1
        y = jnp.maximum(y, 0.0)

        # conv2 + BN2 (folded)
        build_rhs(y)
        z = jnp.dot(w2, rhs_ref[...], preferred_element_type=jnp.float32) + b2

        # residual add (stride=1, downsample=None -> identity is raw input), ReLU
        o_ref[b] = jnp.maximum(z + x, 0.0).astype(o_ref.dtype)
        return carry

    jax.lax.fori_loop(0, TB, per_image, None, unroll=True)


# ----------------------------------------------------------------------------
# Parameter folding / helpers.
# ----------------------------------------------------------------------------
def _fold_conv_bn(w, gamma, beta, mean, var, eps=1e-5):
    """Fold an eval-mode BatchNorm into the preceding bias-free 3x3 conv.

    Returns a (Cout, 9*Cin) weight (tap-major, channel-minor, matching the
    in-kernel tap order) and a (Cout, 1) bias.
    """
    s = gamma / jnp.sqrt(var + eps)                          # (Cout,)
    w_eff = w * s[:, None, None, None]                       # (Cout, Cin, 3, 3)
    cout, cin = w.shape[0], w.shape[1]
    w_flat = jnp.transpose(w_eff, (0, 2, 3, 1)).reshape(cout, 9 * cin)
    b_eff = (beta - mean * s).reshape(cout, 1)
    return w_flat.astype(jnp.float32), b_eff.astype(jnp.float32)


def _border_mask(H, W):
    """(9, H*W) f32 mask: 1 where the shifted tap stays inside the image."""
    hw = jnp.arange(H * W)
    hh, ww = hw // W, hw % W
    rows = []
    for a in (-1, 0, 1):
        for b in (-1, 0, 1):
            ok = (hh + a >= 0) & (hh + a < H) & (ww + b >= 0) & (ww + b < W)
            rows.append(ok.astype(jnp.float32))
    return jnp.stack(rows)


def _pick_batch_block(N):
    """Largest power-of-two divisor of N up to 8; prefer >=2 grid steps when
    the batch is big enough so a megacore (v7x) can split the grid."""
    tb = 1
    for cand in (8, 4, 2):
        if N % cand == 0:
            tb = cand
            break
    if tb > 1 and N // tb < 2 and N >= 4:
        tb //= 2
    return tb


# ----------------------------------------------------------------------------
# Wrapper: NCHW in/out, batch-blocked grid, no transposes (only free reshapes).
# ----------------------------------------------------------------------------
def resnet_basic_block(x_nchw, params, *, eps=1e-5, mxu_bf16=False):
    N, Cin, H, W = x_nchw.shape
    Cout = params["w1"].shape[0]
    assert Cin == Cout, "identity residual requires inplanes == planes"
    HW = H * W
    # Lane-dense, unmasked stores require a multiple-of-128 spatial axis.
    # TODO(synk): pad the flattened spatial axis for H*W not divisible by 128.
    assert HW % 128 == 0, "H*W must be a multiple of 128"

    mxu_dtype = jnp.bfloat16 if mxu_bf16 else jnp.float32

    w1f, b1 = _fold_conv_bn(params["w1"], params["bn1_gamma"], params["bn1_beta"],
                            params["bn1_mean"], params["bn1_var"], eps)
    w2f, b2 = _fold_conv_bn(params["w2"], params["bn2_gamma"], params["bn2_beta"],
                            params["bn2_mean"], params["bn2_var"], eps)
    w1f = w1f.astype(mxu_dtype)
    w2f = w2f.astype(mxu_dtype)
    mask = _border_mask(H, W)

    TB = _pick_batch_block(N)
    x2d = x_nchw.reshape(N, Cin, HW).astype(jnp.float32)     # contiguous view

    kernel = functools.partial(_resnet_block_kernel, H=H, W=W)

    out = pl.pallas_call(
        kernel,
        out_shape=jax.ShapeDtypeStruct((N, Cout, HW), jnp.float32),
        grid=(N // TB,),
        in_specs=[
            pl.BlockSpec((TB, Cin, HW), lambda n: (n, 0, 0)),
            pl.BlockSpec(w1f.shape, lambda n: (0, 0)),
            pl.BlockSpec(b1.shape, lambda n: (0, 0)),
            pl.BlockSpec(w2f.shape, lambda n: (0, 0)),
            pl.BlockSpec(b2.shape, lambda n: (0, 0)),
            pl.BlockSpec(mask.shape, lambda n: (0, 0)),
        ],
        out_specs=pl.BlockSpec((TB, Cout, HW), lambda n: (n, 0, 0)),
        scratch_shapes=[pltpu.VMEM((9 * Cin, HW), mxu_dtype)],
        compiler_params=pltpu.CompilerParams(
            dimension_semantics=("parallel",)),
    )(x2d, w1f, b1, w2f, b2, mask)
    return out.reshape(N, Cout, H, W)


# ----------------------------------------------------------------------------
# Plain-JAX reference (mirrors the PyTorch forward, eval mode).
# ----------------------------------------------------------------------------
def reference_forward(x, params, eps=1e-5):
    def conv3x3(z, w):
        return jax.lax.conv_general_dilated(
            z, w, window_strides=(1, 1), padding=((1, 1), (1, 1)),
            dimension_numbers=("NCHW", "OIHW", "NCHW"))

    def bn(z, gamma, beta, mean, var):
        s = gamma / jnp.sqrt(var + eps)
        return z * s[None, :, None, None] + (beta - mean * s)[None, :, None, None]

    identity = x
    out = conv3x3(x, params["w1"])
    out = jnp.maximum(bn(out, params["bn1_gamma"], params["bn1_beta"],
                         params["bn1_mean"], params["bn1_var"]), 0.0)
    # F.dropout(p=0.1, training=False) -> identity
    out = conv3x3(out, params["w2"])
    out = bn(out, params["bn2_gamma"], params["bn2_beta"],
             params["bn2_mean"], params["bn2_var"])
    return jnp.maximum(out + identity, 0.0)


def init_params(key, inplanes, planes):
    ks = jax.random.split(key, 10)

    def u(k, shape, scale):
        return jax.random.uniform(k, shape, jnp.float32, -scale, scale)

    fan1 = (inplanes + planes) * 9
    fan2 = (planes + planes) * 9
    return {
        "w1": u(ks[0], (planes, inplanes, 3, 3), math.sqrt(6.0 / fan1)),
        "w2": u(ks[1], (planes, planes, 3, 3), math.sqrt(6.0 / fan2)),
        "bn1_gamma": 1.0 + 0.1 * u(ks[2], (planes,), 0.5),
        "bn1_beta": 0.1 * u(ks[3], (planes,), 0.5),
        "bn1_mean": 0.1 * u(ks[4], (planes,), 0.5),
        "bn1_var": 1.0 + 0.1 * jnp.abs(u(ks[5], (planes,), 0.5)),
        "bn2_gamma": 1.0 + 0.1 * u(ks[6], (planes,), 0.5),
        "bn2_beta": 0.1 * u(ks[7], (planes,), 0.5),
        "bn2_mean": 0.1 * u(ks[8], (planes,), 0.5),
        "bn2_var": 1.0 + 0.1 * jnp.abs(u(ks[9], (planes,), 0.5)),
    }


if __name__ == "__main__":
    key = jax.random.PRNGKey(0)
    kx, kp = jax.random.split(key)

    N, C, H, W = 2, 8, 16, 16                    # inplanes == planes == 8
    x = jax.random.normal(kx, (N, C, H, W), jnp.float32)
    params = init_params(kp, C, C)

    ref = reference_forward(x, params)

    # f32 MXU path: tight agreement with the f32 reference.
    out = jax.block_until_ready(resnet_basic_block(x, params))
    assert out.shape == (N, C, H, W)
    err = float(jnp.max(jnp.abs(out - ref)))
    assert jnp.allclose(out, ref, rtol=1e-4, atol=1e-4), err

    # bf16 MXU-operand path (f32 accumulation): looser tolerance.
    out_bf16 = jax.block_until_ready(resnet_basic_block(x, params, mxu_bf16=True))
    err_bf16 = float(jnp.max(jnp.abs(out_bf16 - ref)))
    assert jnp.allclose(out_bf16, ref, rtol=5e-2, atol=1e-1), err_bf16

    print("KERNEL_OK")
</pallas_src>

<mosaic_0001>
module attributes {stable_mosaic.version = 11 : i64} {
  func.func @_resnet_block_kernel(%arg0: i32, %arg1: memref<2x8x256xf32, #tpu.memory_space<vmem>>, %arg2: memref<8x72xf32, #tpu.memory_space<vmem>>, %arg3: memref<8x1xf32, #tpu.memory_space<vmem>>, %arg4: memref<8x72xf32, #tpu.memory_space<vmem>>, %arg5: memref<8x1xf32, #tpu.memory_space<vmem>>, %arg6: memref<9x256xf32, #tpu.memory_space<vmem>>, %arg7: memref<2x8x256xf32, #tpu.memory_space<vmem>>, %arg8: memref<72x256xf32, #tpu.memory_space<vmem>>) attributes {dimension_semantics = [#tpu.dimension_semantics<parallel>], iteration_bounds = array<i64: 1>, scalar_prefetch = 0 : i64, scratch_operands = 1 : i64, tpu.core_type = #tpu.core_type<tc>, window_params = [{transform_indices = @transform_0, window_bounds = array<i64: 2, 8, 256>}, {pipeline_mode = #tpu.pipeline_mode<synchronous>, transform_indices = @transform_1, window_bounds = array<i64: 8, 72>}, {pipeline_mode = #tpu.pipeline_mode<synchronous>, transform_indices = @transform_2, window_bounds = array<i64: 8, 1>}, {pipeline_mode = #tpu.pipeline_mode<synchronous>, transform_indices = @transform_3, window_bounds = array<i64: 8, 72>}, {pipeline_mode = #tpu.pipeline_mode<synchronous>, transform_indices = @transform_4, window_bounds = array<i64: 8, 1>}, {pipeline_mode = #tpu.pipeline_mode<synchronous>, transform_indices = @transform_5, window_bounds = array<i64: 9, 256>}, {transform_indices = @transform_6, window_bounds = array<i64: 2, 8, 256>}]} {
    %c0 = arith.constant 0 : index
    %c0_0 = arith.constant 0 : index
    %0 = vector.load %arg2[%c0, %c0_0] : memref<8x72xf32, #tpu.memory_space<vmem>>, vector<8x72xf32>
    %c0_1 = arith.constant 0 : index
    %c0_2 = arith.constant 0 : index
    %1 = vector.load %arg4[%c0_1, %c0_2] : memref<8x72xf32, #tpu.memory_space<vmem>>, vector<8x72xf32>
    %c0_3 = arith.constant 0 : index
    %c0_4 = arith.constant 0 : index
    %2 = vector.load %arg3[%c0_3, %c0_4] : memref<8x1xf32, #tpu.memory_space<vmem>>, vector<8x1xf32>
    %c0_5 = arith.constant 0 : index
    %c0_6 = arith.constant 0 : index
    %3 = vector.load %arg5[%c0_5, %c0_6] : memref<8x1xf32, #tpu.memory_space<vmem>>, vector<8x1xf32>
    %c0_7 = arith.constant 0 : index
    %c0_8 = arith.constant 0 : index
    %4 = vector.load %arg6[%c0_7, %c0_8] : memref<9x256xf32, #tpu.memory_space<vmem>>, vector<9x256xf32>
    %c0_i32 = arith.constant 0 : i32
    %5 = arith.index_cast %c0_i32 : i32 to index
    %c0_9 = arith.constant 0 : index
    %c0_10 = arith.constant 0 : index
    %6 = vector.load %arg1[%5, %c0_9, %c0_10] : memref<2x8x256xf32, #tpu.memory_space<vmem>>, vector<1x8x256xf32>
    %7 = vector.shape_cast %6 : vector<1x8x256xf32> to vector<8x256xf32>
    %c17_i32 = arith.constant 17 : i32
    %8 = tpu.dynamic_rotate %7 by %c17_i32 dim 1 : vector<8x256xf32>, i32 -> vector<8x256xf32>
    %9 = vector.extract_strided_slice %4 {offsets = [0, 0], sizes = [1, 256], strides = [1, 1]} : vector<9x256xf32> to vector<1x256xf32>
    %10 = vector.broadcast %9 : vector<1x256xf32> to vector<8x256xf32>
    %11 = arith.mulf %8, %10 : vector<8x256xf32>
    %c0_11 = arith.constant 0 : index
    %c0_12 = arith.constant 0 : index
    %12 = vector.load %arg8[%c0_11, %c0_12] : memref<72x256xf32, #tpu.memory_space<vmem>>, vector<8x256xf32>
    tpu.vector_store %arg8[%c0_11, %c0_12], %11 {strides = array<i32>} : memref<72x256xf32, #tpu.memory_space<vmem>>, vector<8x256xf32>,
    %c16_i32 = arith.constant 16 : i32
    %13 = tpu.dynamic_rotate %7 by %c16_i32 dim 1 : vector<8x256xf32>, i32 -> vector<8x256xf32>
    %14 = vector.extract_strided_slice %4 {offsets = [1, 0], sizes = [1, 256], strides = [1, 1]} : vector<9x256xf32> to vector<1x256xf32>
    %15 = vector.broadcast %14 : vector<1x256xf32> to vector<8x256xf32>
    %16 = arith.mulf %13, %15 : vector<8x256xf32>
    %c8 = arith.constant 8 : index
    %c0_13 = arith.constant 0 : index
    %17 = vector.load %arg8[%c8, %c0_13] : memref<72x256xf32, #tpu.memory_space<vmem>>, vector<8x256xf32>
    tpu.vector_store %arg8[%c8, %c0_13], %16 {strides = array<i32>} : memref<72x256xf32, #tpu.memory_space<vmem>>, vector<8x256xf32>,
    %c15_i32 = arith.constant 15 : i32
    %18 = tpu.dynamic_rotate %7 by %c15_i32 dim 1 : vector<8x256xf32>, i32 -> vector<8x256xf32>
    %19 = vector.extract_strided_slice %4 {offsets = [2, 0], sizes = [1, 256], strides = [1, 1]} : vector<9x256xf32> to vector<1x256xf32>
    %20 = vector.broadcast %19 : vector<1x256xf32> to vector<8x256xf32>
    %21 = arith.mulf %18, %20 : vector<8x256xf32>
    %c16 = arith.constant 16 : index
    %c0_14 = arith.constant 0 : index
    %22 = vector.load %arg8[%c16, %c0_14] : memref<72x256xf32, #tpu.memory_space<vmem>>, vector<8x256xf32>
    tpu.vector_store %arg8[%c16, %c0_14], %21 {strides = array<i32>} : memref<72x256xf32, #tpu.memory_space<vmem>>, vector<8x256xf32>,
    %c1_i32 = arith.constant 1 : i32
    %23 = tpu.dynamic_rotate %7 by %c1_i32 dim 1 : vector<8x256xf32>, i32 -> vector<8x256xf32>
    %24 = vector.extract_strided_slice %4 {offsets = [3, 0], sizes = [1, 256], strides = [1, 1]} : vector<9x256xf32> to vector<1x256xf32>
    %25 = vector.broadcast %24 : vector<1x256xf32> to vector<8x256xf32>
    %26 = arith.mulf %23, %25 : vector<8x256xf32>
    %c24 = arith.constant 24 : index
    %c0_15 = arith.constant 0 : index
    %27 = vector.load %arg8[%c24, %c0_15] : memref<72x256xf32, #tpu.memory_space<vmem>>, vector<8x256xf32>
    tpu.vector_store %arg8[%c24, %c0_15], %26 {strides = array<i32>} : memref<72x256xf32, #tpu.memory_space<vmem>>, vector<8x256xf32>,
    %c32 = arith.constant 32 : index
    %c0_16 = arith.constant 0 : index
    %28 = vector.load %arg8[%c32, %c0_16] : memref<72x256xf32, #tpu.memory_space<vmem>>, vector<8x256xf32>
    tpu.vector_store %arg8[%c32, %c0_16], %7 {strides = array<i32>} : memref<72x256xf32, #tpu.memory_space<vmem>>, vector<8x256xf32>,
    %c255_i32 = arith.constant 255 : i32
    %29 = tpu.dynamic_rotate %7 by %c255_i32 dim 1 : vector<8x256xf32>, i32 -> vector<8x256xf32>
    %30 = vector.extract_strided_slice %4 {offsets = [5, 0], sizes = [1, 256], strides = [1, 1]} : vector<9x256xf32> to vector<1x256xf32>
    %31 = vector.broadcast %30 : vector<1x256xf32> to vector<8x256xf32>
    %32 = arith.mulf %29, %31 : vector<8x256xf32>
    %c40 = arith.constant 40 : index
    %c0_17 = arith.constant 0 : index
    %33 = vector.load %arg8[%c40, %c0_17] : memref<72x256xf32, #tpu.memory_space<vmem>>, vector<8x256xf32>
    tpu.vector_store %arg8[%c40, %c0_17], %32 {strides = array<i32>} : memref<72x256xf32, #tpu.memory_space<vmem>>, vector<8x256xf32>,
    %c241_i32 = arith.constant 241 : i32
    %34 = tpu.dynamic_rotate %7 by %c241_i32 dim 1 : vector<8x256xf32>, i32 -> vector<8x256xf32>
    %35 = vector.extract_strided_slice %4 {offsets = [6, 0], sizes = [1, 256], strides = [1, 1]} : vector<9x256xf32> to vector<1x256xf32>
    %36 = vector.broadcast %35 : vector<1x256xf32> to vector<8x256xf32>
    %37 = arith.mulf %34, %36 : vector<8x256xf32>
    %c48 = arith.constant 48 : index
    %c0_18 = arith.constant 0 : index
    %38 = vector.load %arg8[%c48, %c0_18] : memref<72x256xf32, #tpu.memory_space<vmem>>, vector<8x256xf32>
    tpu.vector_store %arg8[%c48, %c0_18], %37 {strides = array<i32>} : memref<72x256xf32, #tpu.memory_space<vmem>>, vector<8x256xf32>,
    %c240_i32 = arith.constant 240 : i32
    %39 = tpu.dynamic_rotate %7 by %c240_i32 dim 1 : vector<8x256xf32>, i32 -> vector<8x256xf32>
    %40 = vector.extract_strided_slice %4 {offsets = [7, 0], sizes = [1, 256], strides = [1, 1]} : vector<9x256xf32> to vector<1x256xf32>
    %41 = vector.broadcast %40 : vector<1x256xf32> to vector<8x256xf32>
    %42 = arith.mulf %39, %41 : vector<8x256xf32>
    %c56 = arith.constant 56 : index
    %c0_19 = arith.constant 0 : index
    %43 = vector.load %arg8[%c56, %c0_19] : memref<72x256xf32, #tpu.memory_space<vmem>>, vector<8x256xf32>
    tpu.vector_store %arg8[%c56, %c0_19], %42 {strides = array<i32>} : memref<72x256xf32, #tpu.memory_space<vmem>>, vector<8x256xf32>,
    %c239_i32 = arith.constant 239 : i32
    %44 = tpu.dynamic_rotate %7 by %c239_i32 dim 1 : vector<8x256xf32>, i32 -> vector<8x256xf32>
    %45 = vector.extract_strided_slice %4 {offsets = [8, 0], sizes = [1, 256], strides = [1, 1]} : vector<9x256xf32> to vector<1x256xf32>
    %46 = vector.broadcast %45 : vector<1x256xf32> to vector<8x256xf32>
    %47 = arith.mulf %44, %46 : vector<8x256xf32>
    %c64 = arith.constant 64 : index
    %c0_20 = arith.constant 0 : index
    %48 = vector.load %arg8[%c64, %c0_20] : memref<72x256xf32, #tpu.memory_space<vmem>>, vector<8x256xf32>
    tpu.vector_store %arg8[%c64, %c0_20], %47 {strides = array<i32>} : memref<72x256xf32, #tpu.memory_space<vmem>>, vector<8x256xf32>,
    %c0_21 = arith.constant 0 : index
    %c0_22 = arith.constant 0 : index
    %49 = vector.load %arg8[%c0_21, %c0_22] : memref<72x256xf32, #tpu.memory_space<vmem>>, vector<72x256xf32>
    %cst = arith.constant dense<0.000000e+00> : vector<8x256xf32>
    %50 = tpu.matmul %0, %49, %cst {dimension_numbers = #tpu.dot_dimension_numbers<[1], [0], [0], [1], [0, 0, 1, 1], [], []>} : vector<8x72xf32>, vector<72x256xf32>, vector<8x256xf32> -> vector<8x256xf32>
    %51 = vector.broadcast %2 : vector<8x1xf32> to vector<8x256xf32>
    %52 = arith.addf %50, %51 : vector<8x256xf32>
    %cst_23 = arith.constant 0.000000e+00 : f32
    %53 = vector.broadcast %cst_23 : f32 to vector<8x256xf32>
    %54 = arith.maximumf %52, %53 : vector<8x256xf32>
    %c17_i32_24 = arith.constant 17 : i32
    %55 = tpu.dynamic_rotate %54 by %c17_i32_24 dim 1 : vector<8x256xf32>, i32 -> vector<8x256xf32>
    %56 = vector.extract_strided_slice %4 {offsets = [0, 0], sizes = [1, 256], strides = [1, 1]} : vector<9x256xf32> to vector<1x256xf32>
    %57 = vector.broadcast %56 : vector<1x256xf32> to vector<8x256xf32>
    %58 = arith.mulf %55, %57 : vector<8x256xf32>
    %c0_25 = arith.constant 0 : index
    %c0_26 = arith.constant 0 : index
    %59 = vector.load %arg8[%c0_25, %c0_26] : memref<72x256xf32, #tpu.memory_space<vmem>>, vector<8x256xf32>
    tpu.vector_store %arg8[%c0_25, %c0_26], %58 {strides = array<i32>} : memref<72x256xf32, #tpu.memory_space<vmem>>, vector<8x256xf32>,
    %c16_i32_27 = arith.constant 16 : i32
    %60 = tpu.dynamic_rotate %54 by %c16_i32_27 dim 1 : vector<8x256xf32>, i32 -> vector<8x256xf32>
    %61 = vector.extract_strided_slice %4 {offsets = [1, 0], sizes = [1, 256], strides = [1, 1]} : vector<9x256xf32> to vector<1x256xf32>
    %62 = vector.broadcast %61 : vector<1x256xf32> to vector<8x256xf32>
    %63 = arith.mulf %60, %62 : vector<8x256xf32>
    %c8_28 = arith.constant 8 : index
    %c0_29 = arith.constant 0 : index
    %64 = vector.load %arg8[%c8_28, %c0_29] : memref<72x256xf32, #tpu.memory_space<vmem>>, vector<8x256xf32>
    tpu.vector_store %arg8[%c8_28, %c0_29], %63 {strides = array<i32>} : memref<72x256xf32, #tpu.memory_space<vmem>>, vector<8x256xf32>,
    %c15_i32_30 = arith.constant 15 : i32
    %65 = tpu.dynamic_rotate %54 by %c15_i32_30 dim 1 : vector<8x256xf32>, i32 -> vector<8x256xf32>
    %66 = vector.extract_strided_slice %4 {offsets = [2, 0], sizes = [1, 256], strides = [1, 1]} : vector<9x256xf32> to vector<1x256xf32>
    %67 = vector.broadcast %66 : vector<1x256xf32> to vector<8x256xf32>
    %68 = arith.mulf %65, %67 : vector<8x256xf32>
    %c16_31 = arith.constant 16 : index
    %c0_32 = arith.constant 0 : index
    %69 = vector.load %arg8[%c16_31, %c0_32] : memref<72x256xf32, #tpu.memory_space<vmem>>, vector<8x256xf32>
    tpu.vector_store %arg8[%c16_31, %c0_32], %68 {strides = array<i32>} : memref<72x256xf32, #tpu.memory_space<vmem>>, vector<8x256xf32>,
    %c1_i32_33 = arith.constant 1 : i32
    %70 = tpu.dynamic_rotate %54 by %c1_i32_33 dim 1 : vector<8x256xf32>, i32 -> vector<8x256xf32>
    %71 = vector.extract_strided_slice %4 {offsets = [3, 0], sizes = [1, 256], strides = [1, 1]} : vector<9x256xf32> to vector<1x256xf32>
    %72 = vector.broadcast %71 : vector<1x256xf32> to vector<8x256xf32>
    %73 = arith.mulf %70, %72 : vector<8x256xf32>
    %c24_34 = arith.constant 24 : index
    %c0_35 = arith.constant 0 : index
    %74 = vector.load %arg8[%c24_34, %c0_35] : memref<72x256xf32, #tpu.memory_space<vmem>>, vector<8x256xf32>
    tpu.vector_store %arg8[%c24_34, %c0_35], %73 {strides = array<i32>} : memref<72x256xf32, #tpu.memory_space<vmem>>, vector<8x256xf32>,
    %c32_36 = arith.constant 32 : index
    %c0_37 = arith.constant 0 : index
    %75 = vector.load %arg8[%c32_36, %c0_37] : memref<72x256xf32, #tpu.memory_space<vmem>>, vector<8x256xf32>
    tpu.vector_store %arg8[%c32_36, %c0_37], %54 {strides = array<i32>} : memref<72x256xf32, #tpu.memory_space<vmem>>, vector<8x256xf32>,
    %c255_i32_38 = arith.constant 255 : i32
    %76 = tpu.dynamic_rotate %54 by %c255_i32_38 dim 1 : vector<8x256xf32>, i32 -> vector<8x256xf32>
    %77 = vector.extract_strided_slice %4 {offsets = [5, 0], sizes = [1, 256], strides = [1, 1]} : vector<9x256xf32> to vector<1x256xf32>
    %78 = vector.broadcast %77 : vector<1x256xf32> to vector<8x256xf32>
    %79 = arith.mulf %76, %78 : vector<8x256xf32>
    %c40_39 = arith.constant 40 : index
    %c0_40 = arith.constant 0 : index
    %80 = vector.load %arg8[%c40_39, %c0_40] : memref<72x256xf32, #tpu.memory_space<vmem>>, vector<8x256xf32>
    tpu.vector_store %arg8[%c40_39, %c0_40], %79 {strides = array<i32>} : memref<72x256xf32, #tpu.memory_space<vmem>>, vector<8x256xf32>,
    %c241_i32_41 = arith.constant 241 : i32
    %81 = tpu.dynamic_rotate %54 by %c241_i32_41 dim 1 : vector<8x256xf32>, i32 -> vector<8x256xf32>
    %82 = vector.extract_strided_slice %4 {offsets = [6, 0], sizes = [1, 256], strides = [1, 1]} : vector<9x256xf32> to vector<1x256xf32>
    %83 = vector.broadcast %82 : vector<1x256xf32> to vector<8x256xf32>
    %84 = arith.mulf %81, %83 : vector<8x256xf32>
    %c48_42 = arith.constant 48 : index
    %c0_43 = arith.constant 0 : index
    %85 = vector.load %arg8[%c48_42, %c0_43] : memref<72x256xf32, #tpu.memory_space<vmem>>, vector<8x256xf32>
    tpu.vector_store %arg8[%c48_42, %c0_43], %84 {strides = array<i32>} : memref<72x256xf32, #tpu.memory_space<vmem>>, vector<8x256xf32>,
    %c240_i32_44 = arith.constant 240 : i32
    %86 = tpu.dynamic_rotate %54 by %c240_i32_44 dim 1 : vector<8x256xf32>, i32 -> vector<8x256xf32>
    %87 = vector.extract_strided_slice %4 {offsets = [7, 0], sizes = [1, 256], strides = [1, 1]} : vector<9x256xf32> to vector<1x256xf32>
    %88 = vector.broadcast %87 : vector<1x256xf32> to vector<8x256xf32>
    %89 = arith.mulf %86, %88 : vector<8x256xf32>
    %c56_45 = arith.constant 56 : index
    %c0_46 = arith.constant 0 : index
    %90 = vector.load %arg8[%c56_45, %c0_46] : memref<72x256xf32, #tpu.memory_space<vmem>>, vector<8x256xf32>
    tpu.vector_store %arg8[%c56_45, %c0_46], %89 {strides = array<i32>} : memref<72x256xf32, #tpu.memory_space<vmem>>, vector<8x256xf32>,
    %c239_i32_47 = arith.constant 239 : i32
    %91 = tpu.dynamic_rotate %54 by %c239_i32_47 dim 1 : vector<8x256xf32>, i32 -> vector<8x256xf32>
    %92 = vector.extract_strided_slice %4 {offsets = [8, 0], sizes = [1, 256], strides = [1, 1]} : vector<9x256xf32> to vector<1x256xf32>
    %93 = vector.broadcast %92 : vector<1x256xf32> to vector<8x256xf32>
    %94 = arith.mulf %91, %93 : vector<8x256xf32>
    %c64_48 = arith.constant 64 : index
    %c0_49 = arith.constant 0 : index
    %95 = vector.load %arg8[%c64_48, %c0_49] : memref<72x256xf32, #tpu.memory_space<vmem>>, vector<8x256xf32>
    tpu.vector_store %arg8[%c64_48, %c0_49], %94 {strides = array<i32>} : memref<72x256xf32, #tpu.memory_space<vmem>>, vector<8x256xf32>,
    %c0_50 = arith.constant 0 : index
    %c0_51 = arith.constant 0 : index
    %96 = vector.load %arg8[%c0_50, %c0_51] : memref<72x256xf32, #tpu.memory_space<vmem>>, vector<72x256xf32>
    %cst_52 = arith.constant dense<0.000000e+00> : vector<8x256xf32>
    %97 = tpu.matmul %1, %96, %cst_52 {dimension_numbers = #tpu.dot_dimension_numbers<[1], [0], [0], [1], [0, 0, 1, 1], [], []>} : vector<8x72xf32>, vector<72x256xf32>, vector<8x256xf32> -> vector<8x256xf32>
    %98 = vector.broadcast %3 : vector<8x1xf32> to vector<8x256xf32>
    %99 = arith.addf %97, %98 : vector<8x256xf32>
    %100 = arith.addf %99, %7 : vector<8x256xf32>
    %cst_53 = arith.constant 0.000000e+00 : f32
    %101 = vector.broadcast %cst_53 : f32 to vector<8x256xf32>
    %102 = arith.maximumf %100, %101 : vector<8x256xf32>
    %103 = arith.index_cast %c0_i32 : i32 to index
    %c0_54 = arith.constant 0 : index
    %c0_55 = arith.constant 0 : index
    %104 = vector.load %arg7[%103, %c0_54, %c0_55] : memref<2x8x256xf32, #tpu.memory_space<vmem>>, vector<1x8x256xf32>
    %105 = vector.shape_cast %104 : vector<1x8x256xf32> to vector<8x256xf32>
    %106 = vector.shape_cast %102 : vector<8x256xf32> to vector<1x8x256xf32>
    tpu.vector_store %arg7[%103, %c0_54, %c0_55], %106 {strides = array<i32>} : memref<2x8x256xf32, #tpu.memory_space<vmem>>, vector<1x8x256xf32>,
    %c1_i32_56 = arith.constant 1 : i32
    %107 = arith.index_cast %c1_i32_56 : i32 to index
    %c0_57 = arith.constant 0 : index
    %c0_58 = arith.constant 0 : index
    %108 = vector.load %arg1[%107, %c0_57, %c0_58] : memref<2x8x256xf32, #tpu.memory_space<vmem>>, vector<1x8x256xf32>
    %109 = vector.shape_cast %108 : vector<1x8x256xf32> to vector<8x256xf32>
    %c17_i32_59 = arith.constant 17 : i32
    %110 = tpu.dynamic_rotate %109 by %c17_i32_59 dim 1 : vector<8x256xf32>, i32 -> vector<8x256xf32>
    %111 = vector.extract_strided_slice %4 {offsets = [0, 0], sizes = [1, 256], strides = [1, 1]} : vector<9x256xf32> to vector<1x256xf32>
    %112 = vector.broadcast %111 : vector<1x256xf32> to vector<8x256xf32>
    %113 = arith.mulf %110, %112 : vector<8x256xf32>
    %c0_60 = arith.constant 0 : index
    %c0_61 = arith.constant 0 : index
    %114 = vector.load %arg8[%c0_60, %c0_61] : memref<72x256xf32, #tpu.memory_space<vmem>>, vector<8x256xf32>
    tpu.vector_store %arg8[%c0_60, %c0_61], %113 {strides = array<i32>} : memref<72x256xf32, #tpu.memory_space<vmem>>, vector<8x256xf32>,
    %c16_i32_62 = arith.constant 16 : i32
    %115 = tpu.dynamic_rotate %109 by %c16_i32_62 dim 1 : vector<8x256xf32>, i32 -> vector<8x256xf32>
    %116 = vector.extract_strided_slice %4 {offsets = [1, 0], sizes = [1, 256], strides = [1, 1]} : vector<9x256xf32> to vector<1x256xf32>
    %117 = vector.broadcast %116 : vector<1x256xf32> to vector<8x256xf32>
    %118 = arith.mulf %115, %117 : vector<8x256xf32>
    %c8_63 = arith.constant 8 : index
    %c0_64 = arith.constant 0 : index
    %119 = vector.load %arg8[%c8_63, %c0_64] : memref<72x256xf32, #tpu.memory_space<vmem>>, vector<8x256xf32>
    tpu.vector_store %arg8[%c8_63, %c0_64], %118 {strides = array<i32>} : memref<72x256xf32, #tpu.memory_space<vmem>>, vector<8x256xf32>,
    %c15_i32_65 = arith.constant 15 : i32
    %120 = tpu.dynamic_rotate %109 by %c15_i32_65 dim 1 : vector<8x256xf32>, i32 -> vector<8x256xf32>
    %121 = vector.extract_strided_slice %4 {offsets = [2, 0], sizes = [1, 256], strides = [1, 1]} : vector<9x256xf32> to vector<1x256xf32>
    %122 = vector.broadcast %121 : vector<1x256xf32> to vector<8x256xf32>
    %123 = arith.mulf %120, %122 : vector<8x256xf32>
    %c16_66 = arith.constant 16 : index
    %c0_67 = arith.constant 0 : index
    %124 = vector.load %arg8[%c16_66, %c0_67] : memref<72x256xf32, #tpu.memory_space<vmem>>, vector<8x256xf32>
    tpu.vector_store %arg8[%c16_66, %c0_67], %123 {strides = array<i32>} : memref<72x256xf32, #tpu.memory_space<vmem>>, vector<8x256xf32>,
    %c1_i32_68 = arith.constant 1 : i32
    %125 = tpu.dynamic_rotate %109 by %c1_i32_68 dim 1 : vector<8x256xf32>, i32 -> vector<8x256xf32>
    %126 = vector.extract_strided_slice %4 {offsets = [3, 0], sizes = [1, 256], strides = [1, 1]} : vector<9x256xf32> to vector<1x256xf32>
    %127 = vector.broadcast %126 : vector<1x256xf32> to vector<8x256xf32>
    %128 = arith.mulf %125, %127 : vector<8x256xf32>
    %c24_69 = arith.constant 24 : index
    %c0_70 = arith.constant 0 : index
    %129 = vector.load %arg8[%c24_69, %c0_70] : memref<72x256xf32, #tpu.memory_space<vmem>>, vector<8x256xf32>
    tpu.vector_store %arg8[%c24_69, %c0_70], %128 {strides = array<i32>} : memref<72x256xf32, #tpu.memory_space<vmem>>, vector<8x256xf32>,
    %c32_71 = arith.constant 32 : index
    %c0_72 = arith.constant 0 : index
    %130 = vector.load %arg8[%c32_71, %c0_72] : memref<72x256xf32, #tpu.memory_space<vmem>>, vector<8x256xf32>
    tpu.vector_store %arg8[%c32_71, %c0_72], %109 {strides = array<i32>} : memref<72x256xf32, #tpu.memory_space<vmem>>, vector<8x256xf32>,
    %c255_i32_73 = arith.constant 255 : i32
    %131 = tpu.dynamic_rotate %109 by %c255_i32_73 dim 1 : vector<8x256xf32>, i32 -> vector<8x256xf32>
    %132 = vector.extract_strided_slice %4 {offsets = [5, 0], sizes = [1, 256], strides = [1, 1]} : vector<9x256xf32> to vector<1x256xf32>
    %133 = vector.broadcast %132 : vector<1x256xf32> to vector<8x256xf32>
    %134 = arith.mulf %131, %133 : vector<8x256xf32>
    %c40_74 = arith.constant 40 : index
    %c0_75 = arith.constant 0 : index
    %135 = vector.load %arg8[%c40_74, %c0_75] : memref<72x256xf32, #tpu.memory_space<vmem>>, vector<8x256xf32>
    tpu.vector_store %arg8[%c40_74, %c0_75], %134 {strides = array<i32>} : memref<72x256xf32, #tpu.memory_space<vmem>>, vector<8x256xf32>,
    %c241_i32_76 = arith.constant 241 : i32
    %136 = tpu.dynamic_rotate %109 by %c241_i32_76 dim 1 : vector<8x256xf32>, i32 -> vector<8x256xf32>
    %137 = vector.extract_strided_slice %4 {offsets = [6, 0], sizes = [1, 256], strides = [1, 1]} : vector<9x256xf32> to vector<1x256xf32>
    %138 = vector.broadcast %137 : vector<1x256xf32> to vector<8x256xf32>
    %139 = arith.mulf %136, %138 : vector<8x256xf32>
    %c48_77 = arith.constant 48 : index
    %c0_78 = arith.constant 0 : index
    %140 = vector.load %arg8[%c48_77, %c0_78] : memref<72x256xf32, #tpu.memory_space<vmem>>, vector<8x256xf32>
    tpu.vector_store %arg8[%c48_77, %c0_78], %139 {strides = array<i32>} : memref<72x256xf32, #tpu.memory_space<vmem>>, vector<8x256xf32>,
    %c240_i32_79 = arith.constant 240 : i32
    %141 = tpu.dynamic_rotate %109 by %c240_i32_79 dim 1 : vector<8x256xf32>, i32 -> vector<8x256xf32>
    %142 = vector.extract_strided_slice %4 {offsets = [7, 0], sizes = [1, 256], strides = [1, 1]} : vector<9x256xf32> to vector<1x256xf32>
    %143 = vector.broadcast %142 : vector<1x256xf32> to vector<8x256xf32>
    %144 = arith.mulf %141, %143 : vector<8x256xf32>
    %c56_80 = arith.constant 56 : index
    %c0_81 = arith.constant 0 : index
    %145 = vector.load %arg8[%c56_80, %c0_81] : memref<72x256xf32, #tpu.memory_space<vmem>>, vector<8x256xf32>
    tpu.vector_store %arg8[%c56_80, %c0_81], %144 {strides = array<i32>} : memref<72x256xf32, #tpu.memory_space<vmem>>, vector<8x256xf32>,
    %c239_i32_82 = arith.constant 239 : i32
    %146 = tpu.dynamic_rotate %109 by %c239_i32_82 dim 1 : vector<8x256xf32>, i32 -> vector<8x256xf32>
    %147 = vector.extract_strided_slice %4 {offsets = [8, 0], sizes = [1, 256], strides = [1, 1]} : vector<9x256xf32> to vector<1x256xf32>
    %148 = vector.broadcast %147 : vector<1x256xf32> to vector<8x256xf32>
    %149 = arith.mulf %146, %148 : vector<8x256xf32>
    %c64_83 = arith.constant 64 : index
    %c0_84 = arith.constant 0 : index
    %150 = vector.load %arg8[%c64_83, %c0_84] : memref<72x256xf32, #tpu.memory_space<vmem>>, vector<8x256xf32>
    tpu.vector_store %arg8[%c64_83, %c0_84], %149 {strides = array<i32>} : memref<72x256xf32, #tpu.memory_space<vmem>>, vector<8x256xf32>,
    %c0_85 = arith.constant 0 : index
    %c0_86 = arith.constant 0 : index
    %151 = vector.load %arg8[%c0_85, %c0_86] : memref<72x256xf32, #tpu.memory_space<vmem>>, vector<72x256xf32>
    %cst_87 = arith.constant dense<0.000000e+00> : vector<8x256xf32>
    %152 = tpu.matmul %0, %151, %cst_87 {dimension_numbers = #tpu.dot_dimension_numbers<[1], [0], [0], [1], [0, 0, 1, 1], [], []>} : vector<8x72xf32>, vector<72x256xf32>, vector<8x256xf32> -> vector<8x256xf32>
    %153 = vector.broadcast %2 : vector<8x1xf32> to vector<8x256xf32>
    %154 = arith.addf %152, %153 : vector<8x256xf32>
    %cst_88 = arith.constant 0.000000e+00 : f32
    %155 = vector.broadcast %cst_88 : f32 to vector<8x256xf32>
    %156 = arith.maximumf %154, %155 : vector<8x256xf32>
    %c17_i32_89 = arith.constant 17 : i32
    %157 = tpu.dynamic_rotate %156 by %c17_i32_89 dim 1 : vector<8x256xf32>, i32 -> vector<8x256xf32>
    %158 = vector.extract_strided_slice %4 {offsets = [0, 0], sizes = [1, 256], strides = [1, 1]} : vector<9x256xf32> to vector<1x256xf32>
    %159 = vector.broadcast %158 : vector<1x256xf32> to vector<8x256xf32>
    %160 = arith.mulf %157, %159 : vector<8x256xf32>
    %c0_90 = arith.constant 0 : index
    %c0_91 = arith.constant 0 : index
    %161 = vector.load %arg8[%c0_90, %c0_91] : memref<72x256xf32, #tpu.memory_space<vmem>>, vector<8x256xf32>
    tpu.vector_store %arg8[%c0_90, %c0_91], %160 {strides = array<i32>} : memref<72x256xf32, #tpu.memory_space<vmem>>, vector<8x256xf32>,
    %c16_i32_92 = arith.constant 16 : i32
    %162 = tpu.dynamic_rotate %156 by %c16_i32_92 dim 1 : vector<8x256xf32>, i32 -> vector<8x256xf32>
    %163 = vector.extract_strided_slice %4 {offsets = [1, 0], sizes = [1, 256], strides = [1, 1]} : vector<9x256xf32> to vector<1x256xf32>
    %164 = vector.broadcast %163 : vector<1x256xf32> to vector<8x256xf32>
    %165 = arith.mulf %162, %164 : vector<8x256xf32>
    %c8_93 = arith.constant 8 : index
    %c0_94 = arith.constant 0 : index
    %166 = vector.load %arg8[%c8_93, %c0_94] : memref<72x256xf32, #tpu.memory_space<vmem>>, vector<8x256xf32>
    tpu.vector_store %arg8[%c8_93, %c0_94], %165 {strides = array<i32>} : memref<72x256xf32, #tpu.memory_space<vmem>>, vector<8x256xf32>,
    %c15_i32_95 = arith.constant 15 : i32
    %167 = tpu.dynamic_rotate %156 by %c15_i32_95 dim 1 : vector<8x256xf32>, i32 -> vector<8x256xf32>
    %168 = vector.extract_strided_slice %4 {offsets = [2, 0], sizes = [1, 256], strides = [1, 1]} : vector<9x256xf32> to vector<1x256xf32>
    %169 = vector.broadcast %168 : vector<1x256xf32> to vector<8x256xf32>
    %170 = arith.mulf %167, %169 : vector<8x256xf32>
    %c16_96 = arith.constant 16 : index
    %c0_97 = arith.constant 0 : index
    %171 = vector.load %arg8[%c16_96, %c0_97] : memref<72x256xf32, #tpu.memory_space<vmem>>, vector<8x256xf32>
    tpu.vector_store %arg8[%c16_96, %c0_97], %170 {strides = array<i32>} : memref<72x256xf32, #tpu.memory_space<vmem>>, vector<8x256xf32>,
    %c1_i32_98 = arith.constant 1 : i32
    %172 = tpu.dynamic_rotate %156 by %c1_i32_98 dim 1 : vector<8x256xf32>, i32 -> vector<8x256xf32>
    %173 = vector.extract_strided_slice %4 {offsets = [3, 0], sizes = [1, 256], strides = [1, 1]} : vector<9x256xf32> to vector<1x256xf32>
    %174 = vector.broadcast %173 : vector<1x256xf32> to vector<8x256xf32>
    %175 = arith.mulf %172, %174 : vector<8x256xf32>
    %c24_99 = arith.constant 24 : index
    %c0_100 = arith.constant 0 : index
    %176 = vector.load %arg8[%c24_99, %c0_100] : memref<72x256xf32, #tpu.memory_space<vmem>>, vector<8x256xf32>
    tpu.vector_store %arg8[%c24_99, %c0_100], %175 {strides = array<i32>} : memref<72x256xf32, #tpu.memory_space<vmem>>, vector<8x256xf32>,
    %c32_101 = arith.constant 32 : index
    %c0_102 = arith.constant 0 : index
    %177 = vector.load %arg8[%c32_101, %c0_102] : memref<72x256xf32, #tpu.memory_space<vmem>>, vector<8x256xf32>
    tpu.vector_store %arg8[%c32_101, %c0_102], %156 {strides = array<i32>} : memref<72x256xf32, #tpu.memory_space<vmem>>, vector<8x256xf32>,
    %c255_i32_103 = arith.constant 255 : i32
    %178 = tpu.dynamic_rotate %156 by %c255_i32_103 dim 1 : vector<8x256xf32>, i32 -> vector<8x256xf32>
    %179 = vector.extract_strided_slice %4 {offsets = [5, 0], sizes = [1, 256], strides = [1, 1]} : vector<9x256xf32> to vector<1x256xf32>
    %180 = vector.broadcast %179 : vector<1x256xf32> to vector<8x256xf32>
    %181 = arith.mulf %178, %180 : vector<8x256xf32>
    %c40_104 = arith.constant 40 : index
    %c0_105 = arith.constant 0 : index
    %182 = vector.load %arg8[%c40_104, %c0_105] : memref<72x256xf32, #tpu.memory_space<vmem>>, vector<8x256xf32>
    tpu.vector_store %arg8[%c40_104, %c0_105], %181 {strides = array<i32>} : memref<72x256xf32, #tpu.memory_space<vmem>>, vector<8x256xf32>,
    %c241_i32_106 = arith.constant 241 : i32
    %183 = tpu.dynamic_rotate %156 by %c241_i32_106 dim 1 : vector<8x256xf32>, i32 -> vector<8x256xf32>
    %184 = vector.extract_strided_slice %4 {offsets = [6, 0], sizes = [1, 256], strides = [1, 1]} : vector<9x256xf32> to vector<1x256xf32>
    %185 = vector.broadcast %184 : vector<1x256xf32> to vector<8x256xf32>
    %186 = arith.mulf %183, %185 : vector<8x256xf32>
    %c48_107 = arith.constant 48 : index
    %c0_108 = arith.constant 0 : index
    %187 = vector.load %arg8[%c48_107, %c0_108] : memref<72x256xf32, #tpu.memory_space<vmem>>, vector<8x256xf32>
    tpu.vector_store %arg8[%c48_107, %c0_108], %186 {strides = array<i32>} : memref<72x256xf32, #tpu.memory_space<vmem>>, vector<8x256xf32>,
    %c240_i32_109 = arith.constant 240 : i32
    %188 = tpu.dynamic_rotate %156 by %c240_i32_109 dim 1 : vector<8x256xf32>, i32 -> vector<8x256xf32>
    %189 = vector.extract_strided_slice %4 {offsets = [7, 0], sizes = [1, 256], strides = [1, 1]} : vector<9x256xf32> to vector<1x256xf32>
    %190 = vector.broadcast %189 : vector<1x256xf32> to vector<8x256xf32>
    %191 = arith.mulf %188, %190 : vector<8x256xf32>
    %c56_110 = arith.constant 56 : index
    %c0_111 = arith.constant 0 : index
    %192 = vector.load %arg8[%c56_110, %c0_111] : memref<72x256xf32, #tpu.memory_space<vmem>>, vector<8x256xf32>
    tpu.vector_store %arg8[%c56_110, %c0_111], %191 {strides = array<i32>} : memref<72x256xf32, #tpu.memory_space<vmem>>, vector<8x256xf32>,
    %c239_i32_112 = arith.constant 239 : i32
    %193 = tpu.dynamic_rotate %156 by %c239_i32_112 dim 1 : vector<8x256xf32>, i32 -> vector<8x256xf32>
    %194 = vector.extract_strided_slice %4 {offsets = [8, 0], sizes = [1, 256], strides = [1, 1]} : vector<9x256xf32> to vector<1x256xf32>
    %195 = vector.broadcast %194 : vector<1x256xf32> to vector<8x256xf32>
    %196 = arith.mulf %193, %195 : vector<8x256xf32>
    %c64_113 = arith.constant 64 : index
    %c0_114 = arith.constant 0 : index
    %197 = vector.load %arg8[%c64_113, %c0_114] : memref<72x256xf32, #tpu.memory_space<vmem>>, vector<8x256xf32>
    tpu.vector_store %arg8[%c64_113, %c0_114], %196 {strides = array<i32>} : memref<72x256xf32, #tpu.memory_space<vmem>>, vector<8x256xf32>,
    %c0_115 = arith.constant 0 : index
    %c0_116 = arith.constant 0 : index
    %198 = vector.load %arg8[%c0_115, %c0_116] : memref<72x256xf32, #tpu.memory_space<vmem>>, vector<72x256xf32>
    %cst_117 = arith.constant dense<0.000000e+00> : vector<8x256xf32>
    %199 = tpu.matmul %1, %198, %cst_117 {dimension_numbers = #tpu.dot_dimension_numbers<[1], [0], [0], [1], [0, 0, 1, 1], [], []>} : vector<8x72xf32>, vector<72x256xf32>, vector<8x256xf32> -> vector<8x256xf32>
    %200 = vector.broadcast %3 : vector<8x1xf32> to vector<8x256xf32>
    %201 = arith.addf %199, %200 : vector<8x256xf32>
    %202 = arith.addf %201, %109 : vector<8x256xf32>
    %cst_118 = arith.constant 0.000000e+00 : f32
    %203 = vector.broadcast %cst_118 : f32 to vector<8x256xf32>
    %204 = arith.maximumf %202, %203 : vector<8x256xf32>
    %205 = arith.index_cast %c1_i32_56 : i32 to index
    %c0_119 = arith.constant 0 : index
    %c0_120 = arith.constant 0 : index
    %206 = vector.load %arg7[%205, %c0_119, %c0_120] : memref<2x8x256xf32, #tpu.memory_space<vmem>>, vector<1x8x256xf32>
    %207 = vector.shape_cast %206 : vector<1x8x256xf32> to vector<8x256xf32>
    %208 = vector.shape_cast %204 : vector<8x256xf32> to vector<1x8x256xf32>
    tpu.vector_store %arg7[%205, %c0_119, %c0_120], %208 {strides = array<i32>} : memref<2x8x256xf32, #tpu.memory_space<vmem>>, vector<1x8x256xf32>,
    %c2_i32 = arith.constant 2 : i32
    return
  }
  func.func @transform_0(%arg0: i32) -> (i32, i32, i32) {
    %c0_i32 = arith.constant 0 : i32
    %c0_i32_0 = arith.constant 0 : i32
    %c0_i32_1 = arith.constant 0 : i32
    return %arg0, %c0_i32, %c0_i32_0 : i32, i32, i32
  }
  func.func @transform_1(%arg0: i32) -> (i32, i32) {
    %c0_i32 = arith.constant 0 : i32
    %c0_i32_0 = arith.constant 0 : i32
    %c0_i32_1 = arith.constant 0 : i32
    return %c0_i32, %c0_i32_0 : i32, i32
  }
  func.func @transform_2(%arg0: i32) -> (i32, i32) {
    %c0_i32 = arith.constant 0 : i32
    %c0_i32_0 = arith.constant 0 : i32
    %c0_i32_1 = arith.constant 0 : i32
    return %c0_i32, %c0_i32_0 : i32, i32
  }
  func.func @transform_3(%arg0: i32) -> (i32, i32) {
    %c0_i32 = arith.constant 0 : i32
    %c0_i32_0 = arith.constant 0 : i32
    %c0_i32_1 = arith.constant 0 : i32
    return %c0_i32, %c0_i32_0 : i32, i32
  }
  func.func @transform_4(%arg0: i32) -> (i32, i32) {
    %c0_i32 = arith.constant 0 : i32
    %c0_i32_0 = arith.constant 0 : i32
    %c0_i32_1 = arith.constant 0 : i32
    return %c0_i32, %c0_i32_0 : i32, i32
  }
  func.func @transform_5(%arg0: i32) -> (i32, i32) {
    %c0_i32 = arith.constant 0 : i32
    %c0_i32_0 = arith.constant 0 : i32
    %c0_i32_1 = arith.constant 0 : i32
    return %c0_i32, %c0_i32_0 : i32, i32
  }
  func.func @transform_6(%arg0: i32) -> (i32, i32, i32) {
    %c0_i32 = arith.constant 0 : i32
    %c0_i32_0 = arith.constant 0 : i32
    %c0_i32_1 = arith.constant 0 : i32
    return %arg0, %c0_i32, %c0_i32_0 : i32, i32, i32
  }
}

</mosaic_0001>

<llo_original>
// kernel: tpu_custom_call.1
$region0: #{tpu_custom_call.1}
  #allocation0 [shape = 'u32[]', space=smem, size = 0x4, offset = 0x4, fixed_abs, tag = 'smem constant byte address 0x4 - core index']
  #allocation1 [shape = 'u32[144,128]{1,0:T(1,128)}', space=vmem, size = 0x12000, scoped, tag = 'internal scratch']
  #allocation2 [shape = 'f32[72,256]{1,0:T(8,128)}', space=vmem, size = 0x12000, scoped, tag = 'scratch operand']
  %s0 = inlined_call_operand.hbm [shape: f32[2,8,256], index: 0, kind: input, shape index: {}]
  %s1 = inlined_call_operand.hbm [shape: f32[8,72], index: 1, kind: input, shape index: {}]
  %s2 = inlined_call_operand.vmem [shape: f32[8,1], index: 2, kind: input, shape index: {}]
  %s3 = inlined_call_operand.hbm [shape: f32[8,72], index: 3, kind: input, shape index: {}]
  %s4 = inlined_call_operand.vmem [shape: f32[8,1], index: 4, kind: input, shape index: {}]
  %s5 = inlined_call_operand.vmem [shape: f32[9,256], index: 5, kind: input, shape index: {}]
  %s6 = inlined_call_operand.hbm [shape: f32[2,8,256], index: 6, kind: output, shape index: {}]
  %s7 = sld [smem:[#allocation0]]
  $region46: #{tpu_custom_call.1} parent=0
    _
  %s9 = ssub.s32 1, %s7
  %s10 = scalar_select 0, %s9, %s7
  $region1: #{tpu_custom_call.1} parent=0
    #allocation3 [shape = 'u8[16384]{0}', space=vmem, size = 0x4000, scoped, tag = 'input window, operand 0, single buffered']
    #allocation4 [shape = 's32[1]{0}', space=sflag, size = 0x4, scoped, tag = 'scoped memory for tpu_custom_call.1']
    #allocation5 [shape = 's32[1]{0}', space=sflag, size = 0x4, scoped, tag = 'scoped memory for tpu_custom_call.1']
    #allocation6 [shape = 'u8[4096]{0}', space=vmem, size = 0x1000, scoped, tag = 'input window, operand 1, single buffered']
    #allocation7 [shape = 's32[1]{0}', space=sflag, size = 0x4, scoped, tag = 'scoped memory for tpu_custom_call.1']
    #allocation8 [shape = 'u8[4096]{0}', space=vmem, size = 0x1000, scoped, tag = 'input window, operand 3, single buffered']
    #allocation9 [shape = 'u8[16384]{0}', space=vmem, size = 0x4000, scoped, tag = 'output window, operand 0, single buffered']
    %11 = vsyncpa [#allocation4], 0
    %12 = vsyncpa [#allocation7], 0
    %13 = vsyncpa [#allocation5], 0
    // Predicated region
    $region2: #{tpu_custom_call.1} parent=1 // pred_check
      _
    $region3: #{tpu_custom_call.1} parent=1 // pred_check_branch
      %15 = sbr.rel (0) target = $region5
    $region4: #{tpu_custom_call.1} parent=1 // pred_region
      %s17 = ssub.s32 512, 512
      %18 = vsyncadd [#allocation4], %s17
      %s19 = sshll.u32 [#allocation3], 4
      %s20 = int_to_ptr.vmem [resolvable:$true] %s19
      %25 = dma.hbm_to_vmem [thread:$0]  %s0, 512, %s20, [#allocation4], 256, 256, 16
    $region5: #{tpu_custom_call.1} parent=1 // pred_fallthru
      _
    // Predicated region
    $region6: #{tpu_custom_call.1} parent=1 // pred_check
      _
    $region7: #{tpu_custom_call.1} parent=1 // pred_check_branch
      %27 = sbr.rel (0) target = $region9
    $region8: #{tpu_custom_call.1} parent=1 // pred_region
      %s29 = ssub.s32 128, 128
      %30 = vsyncadd [#allocation7], %s29
      %s32 = sshll.u32 [#allocation6], 4
      %s33 = int_to_ptr.vmem [resolvable:$true] %s32
      %35 = dma.hbm_to_vmem [thread:$0]  %s1, 128, %s33, [#allocation7]
    $region9: #{tpu_custom_call.1} parent=1 // pred_fallthru
      _
    // Predicated region
    $region10: #{tpu_custom_call.1} parent=1 // pred_check
      _
    $region11: #{tpu_custom_call.1} parent=1 // pred_check_branch
      %37 = sbr.rel (0) target = $region13
    $region12: #{tpu_custom_call.1} parent=1 // pred_region
      _
    $region13: #{tpu_custom_call.1} parent=1 // pred_fallthru
      _
    // Predicated region
    $region14: #{tpu_custom_call.1} parent=1 // pred_check
      _
    $region15: #{tpu_custom_call.1} parent=1 // pred_check_branch
      %39 = sbr.rel (0) target = $region17
    $region16: #{tpu_custom_call.1} parent=1 // pred_region
      %s41 = ssub.s32 128, 128
      %42 = vsyncadd [#allocation7], %s41
      %s44 = sshll.u32 [#allocation8], 4
      %s45 = int_to_ptr.vmem [resolvable:$true] %s44
      %47 = dma.hbm_to_vmem [thread:$0]  %s3, 128, %s45, [#allocation7]
    $region17: #{tpu_custom_call.1} parent=1 // pred_fallthru
      _
    // Predicated region
    $region18: #{tpu_custom_call.1} parent=1 // pred_check
      _
    $region19: #{tpu_custom_call.1} parent=1 // pred_check_branch
      %49 = sbr.rel (0) target = $region21
    $region20: #{tpu_custom_call.1} parent=1 // pred_region
      _
    $region21: #{tpu_custom_call.1} parent=1 // pred_fallthru
      _
    // Predicated region
    $region22: #{tpu_custom_call.1} parent=1 // pred_check
      _
    $region23: #{tpu_custom_call.1} parent=1 // pred_check_branch
      %51 = sbr.rel (0) target = $region25
    $region24: #{tpu_custom_call.1} parent=1 // pred_region
      _
    $region25: #{tpu_custom_call.1} parent=1 // pred_fallthru
      _
    // Predicated region
    $region26: #{tpu_custom_call.1} parent=1 // pred_check
      _
    $region27: #{tpu_custom_call.1} parent=1 // pred_check_branch
      %53 = sbr.rel (0) target = $region29
    $region28: #{tpu_custom_call.1} parent=1 // pred_region
      %54 = dma.done [#allocation4], 512
    $region29: #{tpu_custom_call.1} parent=1 // pred_fallthru
      _
    // Predicated region
    $region30: #{tpu_custom_call.1} parent=1 // pred_check
      _
    $region31: #{tpu_custom_call.1} parent=1 // pred_check_branch
      %56 = sbr.rel (0) target = $region33
    $region32: #{tpu_custom_call.1} parent=1 // pred_region
      %57 = dma.done [#allocation7], 128
    $region33: #{tpu_custom_call.1} parent=1 // pred_fallthru
      _
    // Predicated region
    $region34: #{tpu_custom_call.1} parent=1 // pred_check
      _
    $region35: #{tpu_custom_call.1} parent=1 // pred_check_branch
      %59 = sbr.rel (0) target = $region37
    $region36: #{tpu_custom_call.1} parent=1 // pred_region
      %60 = dma.done [#allocation7], 128
    $region37: #{tpu_custom_call.1} parent=1 // pred_fallthru
      _
    %v61 = vld [vmem:[#allocation6] sm:$0xff]
    %v62 = vld [vmem:[#allocation8] sm:$0xff]
    %v63 = vld [vmem:[%s2] sm:$0xff]
    %v64 = vld [vmem:[%s4] sm:$0xff]
    %v65 = vld [vmem:[%s5] sm:$0xff]
    %v66 = vld [vmem:[%s5 + $0x8] sm:$0xff]
    %v67 = vld [vmem:[%s5 + $0x10] sm:$0x1]
    %v68 = vld [vmem:[%s5 + $0x18] sm:$0x1]
    %v69 = vld [vmem:[#allocation3] sm:$0xff]
    %v70 = vld [vmem:[#allocation3 + $0x8] sm:$0xff]
    %71 = vrot.lane.b32.xlu0 %v69, 17
    %v72 = vpop.permute.xlu0 %71
    %73 = vrot.lane.b32.xlu0 %v70, 17
    %v74 = vpop.permute.xlu0 %73
    %v75 = vlaneseq
    %v76 = vand.u32 %v75, 127
    %vm77 = vcmp.lt.s32.totalorder %v76, 17
    %v78 = vsel %vm77, %v72, %v74
    %v79 = vsel %vm77, %v74, %v72
    %v80 = vlaneseq
    %v81 = vshrl.u32 %v80, 7
    %v82 = vsub.s32 0, %v81
    %v83 = vrot.slane %v65, %v82
    %v84 = vlaneseq
    %v85 = vshrl.u32 %v84, 7
    %v86 = vsub.s32 0, %v85
    %v87 = vrot.slane %v66, %v86
    %v88 = vmul.f32 %v79, %v83
    %v89 = vmul.f32 %v78, %v87
    %90 = vst [vmem:[#allocation2] sm:$0xff] %v88
    %91 = vst [vmem:[#allocation2 + $0x8] sm:$0xff] %v89
    %92 = vrot.lane.b32.xlu0 %v69, 16
    %v93 = vpop.permute.xlu0 %92
    %94 = vrot.lane.b32.xlu0 %v70, 16
    %v95 = vpop.permute.xlu0 %94
    %vm96 = vcmp.lt.s32.totalorder %v76, 16
    %v97 = vsel %vm96, %v93, %v95
    %v98 = vsel %vm96, %v95, %v93
    %v99 = vlaneseq
    %v100 = vshrl.u32 %v99, 7
    %v101 = vsub.s32 1, %v100
    %v102 = vrot.slane %v65, %v101
    %v103 = vlaneseq
    %v104 = vshrl.u32 %v103, 7
    %v105 = vsub.s32 1, %v104
    %v106 = vrot.slane %v66, %v105
    %v107 = vmul.f32 %v98, %v102
    %v108 = vmul.f32 %v97, %v106
    %109 = vst [vmem:[#allocation2 + $0x10] sm:$0xff] %v107
    %110 = vst [vmem:[#allocation2 + $0x18] sm:$0xff] %v108
    %111 = vrot.lane.b32.xlu0 %v69, 15
    %v112 = vpop.permute.xlu0 %111
    %113 = vrot.lane.b32.xlu0 %v70, 15
    %v114 = vpop.permute.xlu0 %113
    %vm115 = vcmp.lt.s32.totalorder %v76, 15
    %v116 = vsel %vm115, %v112, %v114
    %v117 = vsel %vm115, %v114, %v112
    %v118 = vlaneseq
    %v119 = vshrl.u32 %v118, 7
    %v120 = vsub.s32 2, %v119
    %v121 = vrot.slane %v65, %v120
    %v122 = vlaneseq
    %v123 = vshrl.u32 %v122, 7
    %v124 = vsub.s32 2, %v123
    %v125 = vrot.slane %v66, %v124
    %v126 = vmul.f32 %v117, %v121
    %v127 = vmul.f32 %v116, %v125
    %128 = vst [vmem:[#allocation2 + $0x20] sm:$0xff] %v126
    %129 = vst [vmem:[#allocation2 + $0x28] sm:$0xff] %v127
    %130 = vrot.lane.b32.xlu0 %v69, 1
    %v131 = vpop.permute.xlu0 %130
    %132 = vrot.lane.b32.xlu0 %v70, 1
    %v133 = vpop.permute.xlu0 %132
    %vm134 = vcmp.lt.s32.totalorder %v76, 1
    %v135 = vsel %vm134, %v131, %v133
    %v136 = vsel %vm134, %v133, %v131
    %v137 = vlaneseq
    %v138 = vshrl.u32 %v137, 7
    %v139 = vsub.s32 3, %v138
    %v140 = vrot.slane %v65, %v139
    %v141 = vlaneseq
    %v142 = vshrl.u32 %v141, 7
    %v143 = vsub.s32 3, %v142
    %v144 = vrot.slane %v66, %v143
    %v145 = vmul.f32 %v136, %v140
    %v146 = vmul.f32 %v135, %v144
    %147 = vst [vmem:[#allocation2 + $0x30] sm:$0xff] %v145
    %148 = vst [vmem:[#allocation2 + $0x38] sm:$0xff] %v146
    %149 = vst [vmem:[#allocation2 + $0x40] sm:$0xff] %v69
    %150 = vst [vmem:[#allocation2 + $0x48] sm:$0xff] %v70
    %151 = vrot.lane.b32.xlu0 %v69, 127
    %v152 = vpop.permute.xlu0 %151
    %153 = vrot.lane.b32.xlu0 %v70, 127
    %v154 = vpop.permute.xlu0 %153
    %vm155 = vcmp.lt.s32.totalorder %v76, 127
    %v156 = vsel %vm155, %v152, %v154
    %v157 = vsel %vm155, %v154, %v152
    %v158 = vlaneseq
    %v159 = vshrl.u32 %v158, 7
    %v160 = vsub.s32 5, %v159
    %v161 = vrot.slane %v65, %v160
    %v162 = vlaneseq
    %v163 = vshrl.u32 %v162, 7
    %v164 = vsub.s32 5, %v163
    %v165 = vrot.slane %v66, %v164
    %v166 = vmul.f32 %v156, %v161
    %v167 = vmul.f32 %v157, %v165
    %168 = vst [vmem:[#allocation2 + $0x50] sm:$0xff] %v166
    %169 = vst [vmem:[#allocation2 + $0x58] sm:$0xff] %v167
    %170 = vrot.lane.b32.xlu0 %v69, 113
    %v171 = vpop.permute.xlu0 %170
    %172 = vrot.lane.b32.xlu0 %v70, 113
    %v173 = vpop.permute.xlu0 %172
    %vm174 = vcmp.lt.s32.totalorder %v76, 113
    %v175 = vsel %vm174, %v171, %v173
    %v176 = vsel %vm174, %v173, %v171
    %v177 = vlaneseq
    %v178 = vshrl.u32 %v177, 7
    %v179 = vsub.s32 6, %v178
    %v180 = vrot.slane %v65, %v179
    %v181 = vlaneseq
    %v182 = vshrl.u32 %v181, 7
    %v183 = vsub.s32 6, %v182
    %v184 = vrot.slane %v66, %v183
    %v185 = vmul.f32 %v175, %v180
    %v186 = vmul.f32 %v176, %v184
    %187 = vst [vmem:[#allocation2 + $0x60] sm:$0xff] %v185
    %188 = vst [vmem:[#allocation2 + $0x68] sm:$0xff] %v186
    %189 = vrot.lane.b32.xlu0 %v69, 112
    %v190 = vpop.permute.xlu0 %189
    %191 = vrot.lane.b32.xlu0 %v70, 112
    %v192 = vpop.permute.xlu0 %191
    %vm193 = vcmp.lt.s32.totalorder %v76, 112
    %v194 = vsel %vm193, %v190, %v192
    %v195 = vsel %vm193, %v192, %v190
    %v196 = vlaneseq
    %v197 = vshrl.u32 %v196, 7
    %v198 = vsub.s32 7, %v197
    %v199 = vrot.slane %v65, %v198
    %v200 = vlaneseq
    %v201 = vshrl.u32 %v200, 7
    %v202 = vsub.s32 7, %v201
    %v203 = vrot.slane %v66, %v202
    %v204 = vmul.f32 %v194, %v199
    %v205 = vmul.f32 %v195, %v203
    %206 = vst [vmem:[#allocation2 + $0x70] sm:$0xff] %v204
    %207 = vst [vmem:[#allocation2 + $0x78] sm:$0xff] %v205
    %208 = vrot.lane.b32.xlu0 %v69, 111
    %v209 = vpop.permute.xlu0 %208
    %210 = vrot.lane.b32.xlu0 %v70, 111
    %v211 = vpop.permute.xlu0 %210
    %vm212 = vcmp.lt.s32.totalorder %v76, 111
    %v213 = vsel %vm212, %v209, %v211
    %v214 = vsel %vm212, %v211, %v209
    %v215 = vlaneseq
    %v216 = vshrl.u32 %v215, 7
    %v217 = vsub.s32 0, %v216
    %v218 = vrot.slane %v67, %v217
    %v219 = vlaneseq
    %v220 = vshrl.u32 %v219, 7
    %v221 = vsub.s32 0, %v220
    %v222 = vrot.slane %v68, %v221
    %v223 = vmul.f32 %v213, %v218
    %v224 = vmul.f32 %v214, %v222
    %225 = vst [vmem:[#allocation2 + $0x80] sm:$0xff] %v223
    %226 = vst [vmem:[#allocation2 + $0x88] sm:$0xff] %v224
    %v227 = vld [vmem:[#allocation2] sm:$0xff]
    %v228 = vld [vmem:[#allocation2 + $0x8] sm:$0xff]
    %v229 = vld [vmem:[#allocation2 + $0x10] sm:$0xff]
    %v230 = vld [vmem:[#allocation2 + $0x18] sm:$0xff]
    %v231 = vld [vmem:[#allocation2 + $0x20] sm:$0xff]
    %v232 = vld [vmem:[#allocation2 + $0x28] sm:$0xff]
    %v233 = vld [vmem:[#allocation2 + $0x30] sm:$0xff]
    %v234 = vld [vmem:[#allocation2 + $0x38] sm:$0xff]
    %v235 = vld [vmem:[#allocation2 + $0x40] sm:$0xff]
    %v236 = vld [vmem:[#allocation2 + $0x48] sm:$0xff]
    %v237 = vld [vmem:[#allocation2 + $0x50] sm:$0xff]
    %v238 = vld [vmem:[#allocation2 + $0x58] sm:$0xff]
    %v239 = vld [vmem:[#allocation2 + $0x60] sm:$0xff]
    %v240 = vld [vmem:[#allocation2 + $0x68] sm:$0xff]
    %v241 = vld [vmem:[#allocation2 + $0x70] sm:$0xff]
    %v242 = vld [vmem:[#allocation2 + $0x78] sm:$0xff]
    %v243 = vld [vmem:[#allocation2 + $0x80] sm:$0xff]
    %v244 = vld [vmem:[#allocation2 + $0x88] sm:$0xff]
    %246 = vset.pattern.permute.xlu0 0
    %247 = vperm.xlu0 %246, %v63
    %v248 = vpop.permute.xlu0 %247
    %vm250 = vcmask 588800
    %v252 = vsel %vm250, %v61, 0
    %254 = vmatprep.subr.mxu0 %v228
    %255 = vmatpush1.msra.mxu0 %v227
    %256 = vmatprep.subr.mxu0 %v230
    %257 = vmatpush1.msra.mxu0 %v229
    %258 = vmatprep.subr.mxu0 %v232
    %259 = vmatpush1.msra.mxu0 %v231
    %260 = vmatprep.subr.mxu0 %v234
    %261 = vmatpush1.msra.mxu0 %v233
    %262 = vmatprep.subr.mxu0 %v236
    %263 = vmatpush1.msra.mxu0 %v235
    %264 = vmatprep.subr.mxu0 %v238
    %265 = vmatpush1.msra.mxu0 %v237
    %266 = vmatprep.subr.mxu0 %v240
    %267 = vmatpush1.msra.mxu0 %v239
    %268 = vmatprep.subr.mxu0 %v242
    %269 = vmatpush1.msra.mxu0 %v241
    %270 = vmatprep.subr.mxu0 %v244
    %271 = vmatpush1.msra.mxu0 %v243
    %272 = vmatprep.subr.mxu0 0.0
    %273 = vmatpush1.msra.mxu0 0.0
    %274 = vmatprep.subr.mxu0 0.0
    %275 = vmatpush1.msra.mxu0 0.0
    %276 = vmatprep.subr.mxu0 0.0
    %277 = vmatpush1.msra.mxu0 0.0
    %278 = vmatprep.subr.mxu0 0.0
    %279 = vmatpush1.msra.mxu0 0.0
    %280 = vmatprep.subr.mxu0 0.0
    %281 = vmatpush1.msra.mxu0 0.0
    %282 = vmatprep.subr.mxu0 0.0
    %283 = vmatpush1.msra.mxu0 0.0
    %284 = vmatprep.subr.mxu0 0.0
    %285 = vmatpush1.msra.mxu0 0.0
    %286 = vmatprep.subr.mxu0 0.0
    %287 = vmatpush1.msra.mxu0 0.0
    %288 = vmatprep.subr.mxu0 0.0
    %289 = vmatpush1.msra.mxu0 0.0
    %290 = vmatprep.subr.mxu0 0.0
    %291 = vmatpush1.msra.mxu0 0.0
    %292 = vmatprep.subr.mxu0 0.0
    %293 = vmatpush1.msra.mxu0 0.0
    %294 = vmatprep.subr.mxu0 0.0
    %295 = vmatpush1.msra.mxu0 0.0
    %296 = vmatprep.subr.mxu0 0.0
    %297 = vmatpush1.msra.mxu0 0.0
    %298 = vmatprep.subr.mxu0 0.0
    %299 = vmatpush1.msra.mxu0 0.0
    %300 = vmatprep.subr.mxu0 0.0
    %301 = vmatpush1.msra.mxu0 0.0
    %302 = vmatprep.subr.mxu0 0.0
    %303 = vmatpush1.msra.mxu0 0.0
    %304 = vmatprep.subr.mxu0 0.0
    %305 = vmatpush1.msra.mxu0 0.0
    %306 = vmatprep.subr.mxu0 0.0
    %307 = vmatpush1.msra.mxu0 0.0
    %308 = vmatprep.subr.mxu0 0.0
    %309 = vmatpush1.msra.mxu0 0.0
    %310 = vmatprep.subr.mxu0 0.0
    %311 = vmatpush1.msra.mxu0 0.0
    %312 = vmatprep.subr.mxu0 0.0
    %313 = vmatpush1.msra.mxu0 0.0
    %314 = vmatprep.subr.mxu0 0.0
    %315 = vmatpush1.msra.mxu0 0.0
    %316 = vmatprep.subr.mxu0 0.0
    %317 = vmatpush1.msra.mxu0 0.0
    %318 = vmatprep.mubr.f32.mxu0 0.0
    %319 = vmatmul.mubr.f32.gmra.mrb[0].mxu0 %v252
    %v320 = vpop.f32.mrb[0].mxu0
    %v321 = vadd.f32 %v248, %v320
    %v322 = vpop.f32.mrb[0].mxu0
    %v323 = vadd.f32 %v248, %v322
    %324 = vdwg.mxu0
    %v325 = vmax.f32 %v321, 0.0
    %v326 = vmax.f32 %v323, 0.0
    %327 = vrot.lane.b32.xlu0 %v325, 17
    %v328 = vpop.permute.xlu0 %327
    %329 = vrot.lane.b32.xlu0 %v326, 17
    %v330 = vpop.permute.xlu0 %329
    %v331 = vsel %vm77, %v328, %v330
    %v332 = vsel %vm77, %v330, %v328
    %v333 = vmul.f32 %v332, %v83
    %v334 = vmul.f32 %v331, %v87
    %335 = vst [vmem:[#allocation2] sm:$0xff] %v333
    %336 = vst [vmem:[#allocation2 + $0x8] sm:$0xff] %v334
    %337 = vrot.lane.b32.xlu0 %v325, 16
    %v338 = vpop.permute.xlu0 %337
    %339 = vrot.lane.b32.xlu0 %v326, 16
    %v340 = vpop.permute.xlu0 %339
    %v341 = vsel %vm96, %v338, %v340
    %v342 = vsel %vm96, %v340, %v338
    %v343 = vmul.f32 %v342, %v102
    %v344 = vmul.f32 %v341, %v106
    %345 = vst [vmem:[#allocation2 + $0x10] sm:$0xff] %v343
    %346 = vst [vmem:[#allocation2 + $0x18] sm:$0xff] %v344
    %347 = vrot.lane.b32.xlu0 %v325, 15
    %v348 = vpop.permute.xlu0 %347
    %349 = vrot.lane.b32.xlu0 %v326, 15
    %v350 = vpop.permute.xlu0 %349
    %v351 = vsel %vm115, %v348, %v350
    %v352 = vsel %vm115, %v350, %v348
    %v353 = vmul.f32 %v352, %v121
    %v354 = vmul.f32 %v351, %v125
    %355 = vst [vmem:[#allocation2 + $0x20] sm:$0xff] %v353
    %356 = vst [vmem:[#allocation2 + $0x28] sm:$0xff] %v354
    %357 = vrot.lane.b32.xlu0 %v325, 1
    %v358 = vpop.permute.xlu0 %357
    %359 = vrot.lane.b32.xlu0 %v326, 1
    %v360 = vpop.permute.xlu0 %359
    %v361 = vsel %vm134, %v358, %v360
    %v362 = vsel %vm134, %v360, %v358
    %v363 = vmul.f32 %v362, %v140
    %v364 = vmul.f32 %v361, %v144
    %365 = vst [vmem:[#allocation2 + $0x30] sm:$0xff] %v363
    %366 = vst [vmem:[#allocation2 + $0x38] sm:$0xff] %v364
    %367 = vst [vmem:[#allocation2 + $0x40] sm:$0xff] %v325
    %368 = vst [vmem:[#allocation2 + $0x48] sm:$0xff] %v326
    %369 = vrot.lane.b32.xlu0 %v325, 127
    %v370 = vpop.permute.xlu0 %369
    %371 = vrot.lane.b32.xlu0 %v326, 127
    %v372 = vpop.permute.xlu0 %371
    %v373 = vsel %vm155, %v370, %v372
    %v374 = vsel %vm155, %v372, %v370
    %v375 = vmul.f32 %v373, %v161
    %v376 = vmul.f32 %v374, %v165
    %377 = vst [vmem:[#allocation2 + $0x50] sm:$0xff] %v375
    %378 = vst [vmem:[#allocation2 + $0x58] sm:$0xff] %v376
    %379 = vrot.lane.b32.xlu0 %v325, 113
    %v380 = vpop.permute.xlu0 %379
    %381 = vrot.lane.b32.xlu0 %v326, 113
    %v382 = vpop.permute.xlu0 %381
    %v383 = vsel %vm174, %v380, %v382
    %v384 = vsel %vm174, %v382, %v380
    %v385 = vmul.f32 %v383, %v180
    %v386 = vmul.f32 %v384, %v184
    %387 = vst [vmem:[#allocation2 + $0x60] sm:$0xff] %v385
    %388 = vst [vmem:[#allocation2 + $0x68] sm:$0xff] %v386
    %389 = vrot.lane.b32.xlu0 %v325, 112
    %v390 = vpop.permute.xlu0 %389
    %391 = vrot.lane.b32.xlu0 %v326, 112
    %v392 = vpop.permute.xlu0 %391
    %v393 = vsel %vm193, %v390, %v392
    %v394 = vsel %vm193, %v392, %v390
    %v395 = vmul.f32 %v393, %v199
    %v396 = vmul.f32 %v394, %v203
    %397 = vst [vmem:[#allocation2 + $0x70] sm:$0xff] %v395
    %398 = vst [vmem:[#allocation2 + $0x78] sm:$0xff] %v396
    %399 = vrot.lane.b32.xlu0 %v325, 111
    %v400 = vpop.permute.xlu0 %399
    %401 = vrot.lane.b32.xlu0 %v326, 111
    %v402 = vpop.permute.xlu0 %401
    %v403 = vsel %vm212, %v400, %v402
    %v404 = vsel %vm212, %v402, %v400
    %v405 = vmul.f32 %v403, %v218
    %v406 = vmul.f32 %v404, %v222
    %407 = vst [vmem:[#allocation2 + $0x80] sm:$0xff] %v405
    %408 = vst [vmem:[#allocation2 + $0x88] sm:$0xff] %v406
    %v409 = vld [vmem:[#allocation2] sm:$0xff]
    %v410 = vld [vmem:[#allocation2 + $0x8] sm:$0xff]
    %v411 = vld [vmem:[#allocation2 + $0x10] sm:$0xff]
    %v412 = vld [vmem:[#allocation2 + $0x18] sm:$0xff]
    %v413 = vld [vmem:[#allocation2 + $0x20] sm:$0xff]
    %v414 = vld [vmem:[#allocation2 + $0x28] sm:$0xff]
    %v415 = vld [vmem:[#allocation2 + $0x30] sm:$0xff]
    %v416 = vld [vmem:[#allocation2 + $0x38] sm:$0xff]
    %v417 = vld [vmem:[#allocation2 + $0x40] sm:$0xff]
    %v418 = vld [vmem:[#allocation2 + $0x48] sm:$0xff]
    %v419 = vld [vmem:[#allocation2 + $0x50] sm:$0xff]
    %v420 = vld [vmem:[#allocation2 + $0x58] sm:$0xff]
    %v421 = vld [vmem:[#allocation2 + $0x60] sm:$0xff]
    %v422 = vld [vmem:[#allocation2 + $0x68] sm:$0xff]
    %v423 = vld [vmem:[#allocation2 + $0x70] sm:$0xff]
    %v424 = vld [vmem:[#allocation2 + $0x78] sm:$0xff]
    %v425 = vld [vmem:[#allocation2 + $0x80] sm:$0xff]
    %v426 = vld [vmem:[#allocation2 + $0x88] sm:$0xff]
    %428 = vset.pattern.permute.xlu0 0
    %429 = vperm.xlu0 %428, %v64
    %v430 = vpop.permute.xlu0 %429
    %v433 = vsel %vm250, %v62, 0
    %435 = vmatprep.subr.mxu0 %v410
    %436 = vmatpush1.msra.mxu0 %v409
    %437 = vmatprep.subr.mxu0 %v412
    %438 = vmatpush1.msra.mxu0 %v411
    %439 = vmatprep.subr.mxu0 %v414
    %440 = vmatpush1.msra.mxu0 %v413
    %441 = vmatprep.subr.mxu0 %v416
    %442 = vmatpush1.msra.mxu0 %v415
    %443 = vmatprep.subr.mxu0 %v418
    %444 = vmatpush1.msra.mxu0 %v417
    %445 = vmatprep.subr.mxu0 %v420
    %446 = vmatpush1.msra.mxu0 %v419
    %447 = vmatprep.subr.mxu0 %v422
    %448 = vmatpush1.msra.mxu0 %v421
    %449 = vmatprep.subr.mxu0 %v424
    %450 = vmatpush1.msra.mxu0 %v423
    %451 = vmatprep.subr.mxu0 %v426
    %452 = vmatpush1.msra.mxu0 %v425
    %453 = vmatprep.subr.mxu0 0.0
    %454 = vmatpush1.msra.mxu0 0.0
    %455 = vmatprep.subr.mxu0 0.0
    %456 = vmatpush1.msra.mxu0 0.0
    %457 = vmatprep.subr.mxu0 0.0
    %458 = vmatpush1.msra.mxu0 0.0
    %459 = vmatprep.subr.mxu0 0.0
    %460 = vmatpush1.msra.mxu0 0.0
    %461 = vmatprep.subr.mxu0 0.0
    %462 = vmatpush1.msra.mxu0 0.0
    %463 = vmatprep.subr.mxu0 0.0
    %464 = vmatpush1.msra.mxu0 0.0
    %465 = vmatprep.subr.mxu0 0.0
    %466 = vmatpush1.msra.mxu0 0.0
    %467 = vmatprep.subr.mxu0 0.0
    %468 = vmatpush1.msra.mxu0 0.0
    %469 = vmatprep.subr.mxu0 0.0
    %470 = vmatpush1.msra.mxu0 0.0
    %471 = vmatprep.subr.mxu0 0.0
    %472 = vmatpush1.msra.mxu0 0.0
    %473 = vmatprep.subr.mxu0 0.0
    %474 = vmatpush1.msra.mxu0 0.0
    %475 = vmatprep.subr.mxu0 0.0
    %476 = vmatpush1.msra.mxu0 0.0
    %477 = vmatprep.subr.mxu0 0.0
    %478 = vmatpush1.msra.mxu0 0.0
    %479 = vmatprep.subr.mxu0 0.0
    %480 = vmatpush1.msra.mxu0 0.0
    %481 = vmatprep.subr.mxu0 0.0
    %482 = vmatpush1.msra.mxu0 0.0
    %483 = vmatprep.subr.mxu0 0.0
    %484 = vmatpush1.msra.mxu0 0.0
    %485 = vmatprep.subr.mxu0 0.0
    %486 = vmatpush1.msra.mxu0 0.0
    %487 = vmatprep.subr.mxu0 0.0
    %488 = vmatpush1.msra.mxu0 0.0
    %489 = vmatprep.subr.mxu0 0.0
    %490 = vmatpush1.msra.mxu0 0.0
    %491 = vmatprep.subr.mxu0 0.0
    %492 = vmatpush1.msra.mxu0 0.0
    %493 = vmatprep.subr.mxu0 0.0
    %494 = vmatpush1.msra.mxu0 0.0
    %495 = vmatprep.subr.mxu0 0.0
    %496 = vmatpush1.msra.mxu0 0.0
    %497 = vmatprep.subr.mxu0 0.0
    %498 = vmatpush1.msra.mxu0 0.0
    %499 = vmatprep.mubr.f32.mxu0 0.0
    %500 = vmatmul.mubr.f32.gmra.mrb[0].mxu0 %v433
    %v501 = vpop.f32.mrb[0].mxu0
    %v502 = vadd.f32 %v430, %v501
    %v503 = vpop.f32.mrb[0].mxu0
    %v504 = vadd.f32 %v430, %v503
    %505 = vdwg.mxu0
    %v506 = vadd.f32 %v502, %v69
    %v507 = vadd.f32 %v504, %v70
    %v508 = vmax.f32 %v506, 0.0
    %v509 = vmax.f32 %v507, 0.0
    %510 = vst [vmem:[#allocation9] sm:$0xff] %v508
    %511 = vst [vmem:[#allocation9 + $0x8] sm:$0xff] %v509
    %s512 = scalar_lea.vmem [#allocation3], 16
    %v513 = vld [vmem:[%s512] sm:$0xff]
    %v514 = vld [vmem:[%s512 + $0x8] sm:$0xff]
    %515 = vrot.lane.b32.xlu0 %v513, 17
    %v516 = vpop.permute.xlu0 %515
    %517 = vrot.lane.b32.xlu0 %v514, 17
    %v518 = vpop.permute.xlu0 %517
    %v519 = vsel %vm77, %v516, %v518
    %v520 = vsel %vm77, %v518, %v516
    %v521 = vmul.f32 %v520, %v83
    %v522 = vmul.f32 %v519, %v87
    %523 = vst [vmem:[#allocation2] sm:$0xff] %v521
    %524 = vst [vmem:[#allocation2 + $0x8] sm:$0xff] %v522
    %525 = vrot.lane.b32.xlu0 %v513, 16
    %v526 = vpop.permute.xlu0 %525
    %527 = vrot.lane.b32.xlu0 %v514, 16
    %v528 = vpop.permute.xlu0 %527
    %v529 = vsel %vm96, %v526, %v528
    %v530 = vsel %vm96, %v528, %v526
    %v531 = vmul.f32 %v530, %v102
    %v532 = vmul.f32 %v529, %v106
    %533 = vst [vmem:[#allocation2 + $0x10] sm:$0xff] %v531
    %534 = vst [vmem:[#allocation2 + $0x18] sm:$0xff] %v532
    %535 = vrot.lane.b32.xlu0 %v513, 15
    %v536 = vpop.permute.xlu0 %535
    %537 = vrot.lane.b32.xlu0 %v514, 15
    %v538 = vpop.permute.xlu0 %537
    %v539 = vsel %vm115, %v536, %v538
    %v540 = vsel %vm115, %v538, %v536
    %v541 = vmul.f32 %v540, %v121
    %v542 = vmul.f32 %v539, %v125
    %543 = vst [vmem:[#allocation2 + $0x20] sm:$0xff] %v541
    %544 = vst [vmem:[#allocation2 + $0x28] sm:$0xff] %v542
    %545 = vrot.lane.b32.xlu0 %v513, 1
    %v546 = vpop.permute.xlu0 %545
    %547 = vrot.lane.b32.xlu0 %v514, 1
    %v548 = vpop.permute.xlu0 %547
    %v549 = vsel %vm134, %v546, %v548
    %v550 = vsel %vm134, %v548, %v546
    %v551 = vmul.f32 %v550, %v140
    %v552 = vmul.f32 %v549, %v144
    %553 = vst [vmem:[#allocation2 + $0x30] sm:$0xff] %v551
    %554 = vst [vmem:[#allocation2 + $0x38] sm:$0xff] %v552
    %555 = vst [vmem:[#allocation2 + $0x40] sm:$0xff] %v513
    %556 = vst [vmem:[#allocation2 + $0x48] sm:$0xff] %v514
    %557 = vrot.lane.b32.xlu0 %v513, 127
    %v558 = vpop.permute.xlu0 %557
    %559 = vrot.lane.b32.xlu0 %v514, 127
    %v560 = vpop.permute.xlu0 %559
    %v561 = vsel %vm155, %v558, %v560
    %v562 = vsel %vm155, %v560, %v558
    %v563 = vmul.f32 %v561, %v161
    %v564 = vmul.f32 %v562, %v165
    %565 = vst [vmem:[#allocation2 + $0x50] sm:$0xff] %v563
    %566 = vst [vmem:[#allocation2 + $0x58] sm:$0xff] %v564
    %567 = vrot.lane.b32.xlu0 %v513, 113
    %v568 = vpop.permute.xlu0 %567
    %569 = vrot.lane.b32.xlu0 %v514, 113
    %v570 = vpop.permute.xlu0 %569
    %v571 = vsel %vm174, %v568, %v570
    %v572 = vsel %vm174, %v570, %v568
    %v573 = vmul.f32 %v571, %v180
    %v574 = vmul.f32 %v572, %v184
    %575 = vst [vmem:[#allocation2 + $0x60] sm:$0xff] %v573
    %576 = vst [vmem:[#allocation2 + $0x68] sm:$0xff] %v574
    %577 = vrot.lane.b32.xlu0 %v513, 112
    %v578 = vpop.permute.xlu0 %577
    %579 = vrot.lane.b32.xlu0 %v514, 112
    %v580 = vpop.permute.xlu0 %579
    %v581 = vsel %vm193, %v578, %v580
    %v582 = vsel %vm193, %v580, %v578
    %v583 = vmul.f32 %v581, %v199
    %v584 = vmul.f32 %v582, %v203
    %585 = vst [vmem:[#allocation2 + $0x70] sm:$0xff] %v583
    %586 = vst [vmem:[#allocation2 + $0x78] sm:$0xff] %v584
    %587 = vrot.lane.b32.xlu0 %v513, 111
    %v588 = vpop.permute.xlu0 %587
    %589 = vrot.lane.b32.xlu0 %v514, 111
    %v590 = vpop.permute.xlu0 %589
    %v591 = vsel %vm212, %v588, %v590
    %v592 = vsel %vm212, %v590, %v588
    %v593 = vmul.f32 %v591, %v218
    %v594 = vmul.f32 %v592, %v222
    %595 = vst [vmem:[#allocation2 + $0x80] sm:$0xff] %v593
    %596 = vst [vmem:[#allocation2 + $0x88] sm:$0xff] %v594
    %v597 = vld [vmem:[#allocation2] sm:$0xff]
    %v598 = vld [vmem:[#allocation2 + $0x8] sm:$0xff]
    %v599 = vld [vmem:[#allocation2 + $0x10] sm:$0xff]
    %v600 = vld [vmem:[#allocation2 + $0x18] sm:$0xff]
    %v601 = vld [vmem:[#allocation2 + $0x20] sm:$0xff]
    %v602 = vld [vmem:[#allocation2 + $0x28] sm:$0xff]
    %v603 = vld [vmem:[#allocation2 + $0x30] sm:$0xff]
    %v604 = vld [vmem:[#allocation2 + $0x38] sm:$0xff]
    %v605 = vld [vmem:[#allocation2 + $0x40] sm:$0xff]
    %v606 = vld [vmem:[#allocation2 + $0x48] sm:$0xff]
    %v607 = vld [vmem:[#allocation2 + $0x50] sm:$0xff]
    %v608 = vld [vmem:[#allocation2 + $0x58] sm:$0xff]
    %v609 = vld [vmem:[#allocation2 + $0x60] sm:$0xff]
    %v610 = vld [vmem:[#allocation2 + $0x68] sm:$0xff]
    %v611 = vld [vmem:[#allocation2 + $0x70] sm:$0xff]
    %v612 = vld [vmem:[#allocation2 + $0x78] sm:$0xff]
    %v613 = vld [vmem:[#allocation2 + $0x80] sm:$0xff]
    %v614 = vld [vmem:[#allocation2 + $0x88] sm:$0xff]
    %615 = vmatprep.subr.mxu0 %v598
    %616 = vmatpush1.msra.mxu0 %v597
    %617 = vmatprep.subr.mxu0 %v600
    %618 = vmatpush1.msra.mxu0 %v599
    %619 = vmatprep.subr.mxu0 %v602
    %620 = vmatpush1.msra.mxu0 %v601
    %621 = vmatprep.subr.mxu0 %v604
    %622 = vmatpush1.msra.mxu0 %v603
    %623 = vmatprep.subr.mxu0 %v606
    %624 = vmatpush1.msra.mxu0 %v605
    %625 = vmatprep.subr.mxu0 %v608
    %626 = vmatpush1.msra.mxu0 %v607
    %627 = vmatprep.subr.mxu0 %v610
    %628 = vmatpush1.msra.mxu0 %v609
    %629 = vmatprep.subr.mxu0 %v612
    %630 = vmatpush1.msra.mxu0 %v611
    %631 = vmatprep.subr.mxu0 %v614
    %632 = vmatpush1.msra.mxu0 %v613
    %633 = vmatprep.subr.mxu0 0.0
    %634 = vmatpush1.msra.mxu0 0.0
    %635 = vmatprep.subr.mxu0 0.0
    %636 = vmatpush1.msra.mxu0 0.0
    %637 = vmatprep.subr.mxu0 0.0
    %638 = vmatpush1.msra.mxu0 0.0
    %639 = vmatprep.subr.mxu0 0.0
    %640 = vmatpush1.msra.mxu0 0.0
    %641 = vmatprep.subr.mxu0 0.0
    %642 = vmatpush1.msra.mxu0 0.0
    %643 = vmatprep.subr.mxu0 0.0
    %644 = vmatpush1.msra.mxu0 0.0
    %645 = vmatprep.subr.mxu0 0.0
    %646 = vmatpush1.msra.mxu0 0.0
    %647 = vmatprep.subr.mxu0 0.0
    %648 = vmatpush1.msra.mxu0 0.0
    %649 = vmatprep.subr.mxu0 0.0
    %650 = vmatpush1.msra.mxu0 0.0
    %651 = vmatprep.subr.mxu0 0.0
    %652 = vmatpush1.msra.mxu0 0.0
    %653 = vmatprep.subr.mxu0 0.0
    %654 = vmatpush1.msra.mxu0 0.0
    %655 = vmatprep.subr.mxu0 0.0
    %656 = vmatpush1.msra.mxu0 0.0
    %657 = vmatprep.subr.mxu0 0.0
    %658 = vmatpush1.msra.mxu0 0.0
    %659 = vmatprep.subr.mxu0 0.0
    %660 = vmatpush1.msra.mxu0 0.0
    %661 = vmatprep.subr.mxu0 0.0
    %662 = vmatpush1.msra.mxu0 0.0
    %663 = vmatprep.subr.mxu0 0.0
    %664 = vmatpush1.msra.mxu0 0.0
    %665 = vmatprep.subr.mxu0 0.0
    %666 = vmatpush1.msra.mxu0 0.0
    %667 = vmatprep.subr.mxu0 0.0
    %668 = vmatpush1.msra.mxu0 0.0
    %669 = vmatprep.subr.mxu0 0.0
    %670 = vmatpush1.msra.mxu0 0.0
    %671 = vmatprep.subr.mxu0 0.0
    %672 = vmatpush1.msra.mxu0 0.0
    %673 = vmatprep.subr.mxu0 0.0
    %674 = vmatpush1.msra.mxu0 0.0
    %675 = vmatprep.subr.mxu0 0.0
    %676 = vmatpush1.msra.mxu0 0.0
    %677 = vmatprep.subr.mxu0 0.0
    %678 = vmatpush1.msra.mxu0 0.0
    %679 = vmatprep.mubr.f32.mxu0 0.0
    %680 = vmatmul.mubr.f32.gmra.mrb[0].mxu0 %v252
    %v681 = vpop.f32.mrb[0].mxu0
    %v682 = vadd.f32 %v248, %v681
    %v683 = vpop.f32.mrb[0].mxu0
    %v684 = vadd.f32 %v248, %v683
    %685 = vdwg.mxu0
    %v686 = vmax.f32 %v682, 0.0
    %v687 = vmax.f32 %v684, 0.0
    %688 = vrot.lane.b32.xlu0 %v686, 17
    %v689 = vpop.permute.xlu0 %688
    %690 = vrot.lane.b32.xlu0 %v687, 17
    %v691 = vpop.permute.xlu0 %690
    %v692 = vsel %vm77, %v689, %v691
    %v693 = vsel %vm77, %v691, %v689
    %v694 = vmul.f32 %v693, %v83
    %v695 = vmul.f32 %v692, %v87
    %696 = vst [vmem:[#allocation2] sm:$0xff] %v694
    %697 = vst [vmem:[#allocation2 + $0x8] sm:$0xff] %v695
    %698 = vrot.lane.b32.xlu0 %v686, 16
    %v699 = vpop.permute.xlu0 %698
    %700 = vrot.lane.b32.xlu0 %v687, 16
    %v701 = vpop.permute.xlu0 %700
    %v702 = vsel %vm96, %v699, %v701
    %v703 = vsel %vm96, %v701, %v699
    %v704 = vmul.f32 %v703, %v102
    %v705 = vmul.f32 %v702, %v106
    %706 = vst [vmem:[#allocation2 + $0x10] sm:$0xff] %v704
    %707 = vst [vmem:[#allocation2 + $0x18] sm:$0xff] %v705
    %708 = vrot.lane.b32.xlu0 %v686, 15
    %v709 = vpop.permute.xlu0 %708
    %710 = vrot.lane.b32.xlu0 %v687, 15
    %v711 = vpop.permute.xlu0 %710
    %v712 = vsel %vm115, %v709, %v711
    %v713 = vsel %vm115, %v711, %v709
    %v714 = vmul.f32 %v713, %v121
    %v715 = vmul.f32 %v712, %v125
    %716 = vst [vmem:[#allocation2 + $0x20] sm:$0xff] %v714
    %717 = vst [vmem:[#allocation2 + $0x28] sm:$0xff] %v715
    %718 = vrot.lane.b32.xlu0 %v686, 1
    %v719 = vpop.permute.xlu0 %718
    %720 = vrot.lane.b32.xlu0 %v687, 1
    %v721 = vpop.permute.xlu0 %720
    %v722 = vsel %vm134, %v719, %v721
    %v723 = vsel %vm134, %v721, %v719
    %v724 = vmul.f32 %v723, %v140
    %v725 = vmul.f32 %v722, %v144
    %726 = vst [vmem:[#allocation2 + $0x30] sm:$0xff] %v724
    %727 = vst [vmem:[#allocation2 + $0x38] sm:$0xff] %v725
    %728 = vst [vmem:[#allocation2 + $0x40] sm:$0xff] %v686
    %729 = vst [vmem:[#allocation2 + $0x48] sm:$0xff] %v687
    %730 = vrot.lane.b32.xlu0 %v686, 127
    %v731 = vpop.permute.xlu0 %730
    %732 = vrot.lane.b32.xlu0 %v687, 127
    %v733 = vpop.permute.xlu0 %732
    %v734 = vsel %vm155, %v731, %v733
    %v735 = vsel %vm155, %v733, %v731
    %v736 = vmul.f32 %v734, %v161
    %v737 = vmul.f32 %v735, %v165
    %738 = vst [vmem:[#allocation2 + $0x50] sm:$0xff] %v736
    %739 = vst [vmem:[#allocation2 + $0x58] sm:$0xff] %v737
    %740 = vrot.lane.b32.xlu0 %v686, 113
    %v741 = vpop.permute.xlu0 %740
    %742 = vrot.lane.b32.xlu0 %v687, 113
    %v743 = vpop.permute.xlu0 %742
    %v744 = vsel %vm174, %v741, %v743
    %v745 = vsel %vm174, %v743, %v741
    %v746 = vmul.f32 %v744, %v180
    %v747 = vmul.f32 %v745, %v184
    %748 = vst [vmem:[#allocation2 + $0x60] sm:$0xff] %v746
    %749 = vst [vmem:[#allocation2 + $0x68] sm:$0xff] %v747
    %750 = vrot.lane.b32.xlu0 %v686, 112
    %v751 = vpop.permute.xlu0 %750
    %752 = vrot.lane.b32.xlu0 %v687, 112
    %v753 = vpop.permute.xlu0 %752
    %v754 = vsel %vm193, %v751, %v753
    %v755 = vsel %vm193, %v753, %v751
    %v756 = vmul.f32 %v754, %v199
    %v757 = vmul.f32 %v755, %v203
    %758 = vst [vmem:[#allocation2 + $0x70] sm:$0xff] %v756
    %759 = vst [vmem:[#allocation2 + $0x78] sm:$0xff] %v757
    %760 = vrot.lane.b32.xlu0 %v686, 111
    %v761 = vpop.permute.xlu0 %760
    %762 = vrot.lane.b32.xlu0 %v687, 111
    %v763 = vpop.permute.xlu0 %762
    %v764 = vsel %vm212, %v761, %v763
    %v765 = vsel %vm212, %v763, %v761
    %v766 = vmul.f32 %v764, %v218
    %v767 = vmul.f32 %v765, %v222
    %768 = vst [vmem:[#allocation2 + $0x80] sm:$0xff] %v766
    %769 = vst [vmem:[#allocation2 + $0x88] sm:$0xff] %v767
    %v770 = vld [vmem:[#allocation2] sm:$0xff]
    %v771 = vld [vmem:[#allocation2 + $0x8] sm:$0xff]
    %v772 = vld [vmem:[#allocation2 + $0x10] sm:$0xff]
    %v773 = vld [vmem:[#allocation2 + $0x18] sm:$0xff]
    %v774 = vld [vmem:[#allocation2 + $0x20] sm:$0xff]
    %v775 = vld [vmem:[#allocation2 + $0x28] sm:$0xff]
    %v776 = vld [vmem:[#allocation2 + $0x30] sm:$0xff]
    %v777 = vld [vmem:[#allocation2 + $0x38] sm:$0xff]
    %v778 = vld [vmem:[#allocation2 + $0x40] sm:$0xff]
    %v779 = vld [vmem:[#allocation2 + $0x48] sm:$0xff]
    %v780 = vld [vmem:[#allocation2 + $0x50] sm:$0xff]
    %v781 = vld [vmem:[#allocation2 + $0x58] sm:$0xff]
    %v782 = vld [vmem:[#allocation2 + $0x60] sm:$0xff]
    %v783 = vld [vmem:[#allocation2 + $0x68] sm:$0xff]
    %v784 = vld [vmem:[#allocation2 + $0x70] sm:$0xff]
    %v785 = vld [vmem:[#allocation2 + $0x78] sm:$0xff]
    %v786 = vld [vmem:[#allocation2 + $0x80] sm:$0xff]
    %v787 = vld [vmem:[#allocation2 + $0x88] sm:$0xff]
    %788 = vmatprep.subr.mxu0 %v771
    %789 = vmatpush1.msra.mxu0 %v770
    %790 = vmatprep.subr.mxu0 %v773
    %791 = vmatpush1.msra.mxu0 %v772
    %792 = vmatprep.subr.mxu0 %v775
    %793 = vmatpush1.msra.mxu0 %v774
    %794 = vmatprep.subr.mxu0 %v777
    %795 = vmatpush1.msra.mxu0 %v776
    %796 = vmatprep.subr.mxu0 %v779
    %797 = vmatpush1.msra.mxu0 %v778
    %798 = vmatprep.subr.mxu0 %v781
    %799 = vmatpush1.msra.mxu0 %v780
    %800 = vmatprep.subr.mxu0 %v783
    %801 = vmatpush1.msra.mxu0 %v782
    %802 = vmatprep.subr.mxu0 %v785
    %803 = vmatpush1.msra.mxu0 %v784
    %804 = vmatprep.subr.mxu0 %v787
    %805 = vmatpush1.msra.mxu0 %v786
    %806 = vmatprep.subr.mxu0 0.0
    %807 = vmatpush1.msra.mxu0 0.0
    %808 = vmatprep.subr.mxu0 0.0
    %809 = vmatpush1.msra.mxu0 0.0
    %810 = vmatprep.subr.mxu0 0.0
    %811 = vmatpush1.msra.mxu0 0.0
    %812 = vmatprep.subr.mxu0 0.0
    %813 = vmatpush1.msra.mxu0 0.0
    %814 = vmatprep.subr.mxu0 0.0
    %815 = vmatpush1.msra.mxu0 0.0
    %816 = vmatprep.subr.mxu0 0.0
    %817 = vmatpush1.msra.mxu0 0.0
    %818 = vmatprep.subr.mxu0 0.0
    %819 = vmatpush1.msra.mxu0 0.0
    %820 = vmatprep.subr.mxu0 0.0
    %821 = vmatpush1.msra.mxu0 0.0
    %822 = vmatprep.subr.mxu0 0.0
    %823 = vmatpush1.msra.mxu0 0.0
    %824 = vmatprep.subr.mxu0 0.0
    %825 = vmatpush1.msra.mxu0 0.0
    %826 = vmatprep.subr.mxu0 0.0
    %827 = vmatpush1.msra.mxu0 0.0
    %828 = vmatprep.subr.mxu0 0.0
    %829 = vmatpush1.msra.mxu0 0.0
    %830 = vmatprep.subr.mxu0 0.0
    %831 = vmatpush1.msra.mxu0 0.0
    %832 = vmatprep.subr.mxu0 0.0
    %833 = vmatpush1.msra.mxu0 0.0
    %834 = vmatprep.subr.mxu0 0.0
    %835 = vmatpush1.msra.mxu0 0.0
    %836 = vmatprep.subr.mxu0 0.0
    %837 = vmatpush1.msra.mxu0 0.0
    %838 = vmatprep.subr.mxu0 0.0
    %839 = vmatpush1.msra.mxu0 0.0
    %840 = vmatprep.subr.mxu0 0.0
    %841 = vmatpush1.msra.mxu0 0.0
    %842 = vmatprep.subr.mxu0 0.0
    %843 = vmatpush1.msra.mxu0 0.0
    %844 = vmatprep.subr.mxu0 0.0
    %845 = vmatpush1.msra.mxu0 0.0
    %846 = vmatprep.subr.mxu0 0.0
    %847 = vmatpush1.msra.mxu0 0.0
    %848 = vmatprep.subr.mxu0 0.0
    %849 = vmatpush1.msra.mxu0 0.0
    %850 = vmatprep.subr.mxu0 0.0
    %851 = vmatpush1.msra.mxu0 0.0
    %852 = vmatprep.mubr.f32.mxu0 0.0
    %853 = vmatmul.mubr.f32.gmra.mrb[0].mxu0 %v433
    %v854 = vpop.f32.mrb[0].mxu0
    %v855 = vadd.f32 %v430, %v854
    %v856 = vpop.f32.mrb[0].mxu0
    %v857 = vadd.f32 %v430, %v856
    %858 = vdwg.mxu0
    %v859 = vadd.f32 %v855, %v513
    %v860 = vadd.f32 %v857, %v514
    %v861 = vmax.f32 %v859, 0.0
    %v862 = vmax.f32 %v860, 0.0
    %s863 = scalar_lea.vmem [#allocation9], 16
    %864 = vst [vmem:[%s863] sm:$0xff] %v861
    %865 = vst [vmem:[%s863 + $0x8] sm:$0xff] %v862
    // Predicated region
    $region38: #{tpu_custom_call.1} parent=1 // pred_check
      _
    $region39: #{tpu_custom_call.1} parent=1 // pred_check_branch
      %867 = sbr.rel (0) target = $region41
    $region40: #{tpu_custom_call.1} parent=1 // pred_region
      %s869 = ssub.s32 512, 512
      %870 = vsyncadd [#allocation5], %s869
      %s871 = sshll.u32 [#allocation9], 4
      %s872 = int_to_ptr.vmem [resolvable:$true] %s871
      %877 = dma.vmem_to_hbm [thread:$0]  %s872, 512, %s6, [#allocation5], 256, 256, 16
    $region41: #{tpu_custom_call.1} parent=1 // pred_fallthru
      _
    // Predicated region
    $region42: #{tpu_custom_call.1} parent=1 // pred_check
      _
    $region43: #{tpu_custom_call.1} parent=1 // pred_check_branch
      %879 = sbr.rel (0) target = $region45
    $region44: #{tpu_custom_call.1} parent=1 // pred_region
      %880 = dma.done [#allocation5], 512
    $region45: #{tpu_custom_call.1} parent=1 // pred_fallthru
      _
    %881 = vsyncpa [#allocation4], 1
    %882 = vsyncpa [#allocation7], 1
    %883 = vsyncpa [#allocation5], 1

</llo_original>
